<compile_context>
chip_gen: v6e
topology: v6e:2x2x1
jax: 0.10.0
libtpu: 0.0.40
codegen_flags: <defaults>
</compile_context>

<pallas_src>
import jax
import jax.numpy as jnp
from jax import lax
from jax.experimental import pallas as pl
from jax.experimental.pallas import tpu as pltpu


# ---------------------------------------------------------------------------
# Fused kernel: all LSTM layers + FC head. Gate order matches PyTorch
# nn.LSTM: [i, f, g, o]. Weights are passed pre-transposed so every matmul is
# a plain row-major (rows, in) @ (in, out) MXU matmul.
# ---------------------------------------------------------------------------
def _make_fused_kernel(num_layers, seq_len, hidden_size):
    T, H = seq_len, hidden_size

    def kernel(*refs):
        x_ref = refs[0]
        layer_refs = refs[1:1 + 3 * num_layers]
        fc_w_ref = refs[1 + 3 * num_layers]
        fc_b_ref = refs[2 + 3 * num_layers]
        out_ref = refs[3 + 3 * num_layers]
        xw_scr = refs[4 + 3 * num_layers]     # (T, 4H) hoisted input projection
        hseq_scr = refs[5 + 3 * num_layers]   # (T, H) inter-layer hidden sequence

        h_last = None
        for layer in range(num_layers):       # static Python loop over layers
            wih_ref, whh_ref, b_ref = layer_refs[3 * layer:3 * layer + 3]

            layer_in = x_ref[...] if layer == 0 else hseq_scr[...]

            # Hoisted input projection: one well-shaped MXU matmul for the
            # whole sequence, off the serial recurrence chain (bias folded in).
            xw_scr[...] = (
                jnp.dot(layer_in, wih_ref[...],
                        preferred_element_type=jnp.float32)
                + b_ref[...]
            )

            whh = whh_ref[...]                     # (H, 4H), stays resident
            write_seq = layer < num_layers - 1     # last layer only needs h_T

            def step(t, carry, whh=whh, write_seq=write_seq):
                h_prev, c_prev = carry
                gates = xw_scr[pl.ds(t, 1), :] + jnp.dot(
                    h_prev, whh, preferred_element_type=jnp.float32)  # (1, 4H)
                i_g = jax.nn.sigmoid(gates[:, 0 * H:1 * H])
                f_g = jax.nn.sigmoid(gates[:, 1 * H:2 * H])
                g_g = jnp.tanh(gates[:, 2 * H:3 * H])
                o_g = jax.nn.sigmoid(gates[:, 3 * H:4 * H])
                c_new = f_g * c_prev + i_g * g_g
                h_new = o_g * jnp.tanh(c_new)
                if write_seq:
                    hseq_scr[pl.ds(t, 1), :] = h_new
                return (h_new, c_new)

            h0 = jnp.zeros((1, H), jnp.float32)
            c0 = jnp.zeros((1, H), jnp.float32)
            # Static trip count -> fully unrolled for scheduler visibility;
            # h/c state lives in vregs through the unrolled chain.
            h_last, _ = lax.fori_loop(0, T, step, (h0, c0), unroll=True)

        # FC head fused into the same kernel: (1, H) @ (H, C) + (1, C).
        out_ref[...] = (
            jnp.dot(h_last, fc_w_ref[...], preferred_element_type=jnp.float32)
            + fc_b_ref[...]
        )

    return kernel


# ---------------------------------------------------------------------------
# Wrapper: single pallas_call, whole arrays resident in VMEM (shapes are tiny).
# TODO(synk): for large T/H, add a grid over T chunks + vmem_limit_bytes
# (v7x has 64 MiB VMEM); unnecessary at these sizes.
# ---------------------------------------------------------------------------
@jax.jit
def lstm_classifier_forward(params, x):
    """x: (seq_len, input_size) -> (1, num_classes). Batch is implicitly 1."""
    T, _ = x.shape
    num_layers = len(params["layers"])
    H = params["layers"][0]["w_hh_t"].shape[0]
    C = params["fc_w_t"].shape[1]

    inputs = [x]
    for lp in params["layers"]:
        inputs += [lp["w_ih_t"], lp["w_hh_t"], lp["bias"]]
    inputs += [params["fc_w_t"], params["fc_b"]]

    vmem = pltpu.MemorySpace.VMEM
    kernel = _make_fused_kernel(num_layers, T, H)
    return pl.pallas_call(
        kernel,
        out_shape=jax.ShapeDtypeStruct((1, C), jnp.float32),
        in_specs=[pl.BlockSpec(memory_space=vmem)] * len(inputs),
        out_specs=pl.BlockSpec(memory_space=vmem),
        scratch_shapes=[
            pltpu.VMEM((T, 4 * H), jnp.float32),   # hoisted input projection
            pltpu.VMEM((T, H), jnp.float32),       # inter-layer hidden sequence
        ],
    )(*inputs)


# ---------------------------------------------------------------------------
# Parameter init (PyTorch-style uniform), weights pre-transposed for row-major
# matmuls; b_ih + b_hh folded into a single bias per layer.
# ---------------------------------------------------------------------------
def init_params(key, input_size, hidden_size, num_layers, num_classes):
    params = {"layers": []}
    scale = 1.0 / jnp.sqrt(hidden_size)
    for layer in range(num_layers):
        in_dim = input_size if layer == 0 else hidden_size
        key, k1, k2, k3, k4 = jax.random.split(key, 5)
        w_ih = jax.random.uniform(k1, (4 * hidden_size, in_dim),
                                  minval=-scale, maxval=scale, dtype=jnp.float32)
        w_hh = jax.random.uniform(k2, (4 * hidden_size, hidden_size),
                                  minval=-scale, maxval=scale, dtype=jnp.float32)
        b_ih = jax.random.uniform(k3, (4 * hidden_size,),
                                  minval=-scale, maxval=scale, dtype=jnp.float32)
        b_hh = jax.random.uniform(k4, (4 * hidden_size,),
                                  minval=-scale, maxval=scale, dtype=jnp.float32)
        params["layers"].append({
            "w_ih_t": w_ih.T,                              # (in_dim, 4H)
            "w_hh_t": w_hh.T,                              # (H, 4H)
            "bias": (b_ih + b_hh).reshape(1, -1),          # (1, 4H)
        })
    key, k5, k6 = jax.random.split(key, 3)
    w_fc = jax.random.uniform(k5, (num_classes, hidden_size),
                              minval=-scale, maxval=scale, dtype=jnp.float32)
    b_fc = jax.random.uniform(k6, (num_classes,),
                              minval=-scale, maxval=scale, dtype=jnp.float32)
    params["fc_w_t"] = w_fc.T                              # (H, C)
    params["fc_b"] = b_fc.reshape(1, -1)                   # (1, C)
    return params


# ---------------------------------------------------------------------------
# Pure-JAX reference (sanity check against PyTorch nn.LSTM semantics)
# ---------------------------------------------------------------------------
def reference_forward(params, x):
    h_seq = x
    for lp in params["layers"]:
        T = h_seq.shape[0]
        H = lp["w_hh_t"].shape[0]
        h = jnp.zeros((1, H), jnp.float32)
        c = jnp.zeros((1, H), jnp.float32)
        outs = []
        for t in range(T):
            gates = h_seq[t:t + 1] @ lp["w_ih_t"] + h @ lp["w_hh_t"] + lp["bias"]
            i_g = jax.nn.sigmoid(gates[:, 0 * H:1 * H])
            f_g = jax.nn.sigmoid(gates[:, 1 * H:2 * H])
            g_g = jnp.tanh(gates[:, 2 * H:3 * H])
            o_g = jax.nn.sigmoid(gates[:, 3 * H:4 * H])
            c = f_g * c + i_g * g_g
            h = o_g * jnp.tanh(c)
            outs.append(h)
        h_seq = jnp.concatenate(outs, axis=0)
    return h_seq[-1:, :] @ params["fc_w_t"] + params["fc_b"]


if __name__ == "__main__":
    seq_len = 8
    input_size = 16
    hidden_size = 32
    num_layers = 2
    num_classes = 4

    key = jax.random.PRNGKey(0)
    key, pkey, xkey = jax.random.split(key, 3)
    params = init_params(pkey, input_size, hidden_size, num_layers, num_classes)
    x = jax.random.normal(xkey, (seq_len, input_size), dtype=jnp.float32)

    out = lstm_classifier_forward(params, x)
    out = jax.block_until_ready(out)

    ref = reference_forward(params, x)
    assert out.shape == (1, num_classes)
    assert jnp.allclose(out, ref, atol=1e-4, rtol=1e-4), (out, ref)

    print("KERNEL_OK")
</pallas_src>

<mosaic_0001>
module attributes {stable_mosaic.version = 11 : i64} {
  func.func @kernel(%arg0: memref<8x16xf32, #tpu.memory_space<vmem>>, %arg1: memref<16x128xf32, #tpu.memory_space<vmem>>, %arg2: memref<32x128xf32, #tpu.memory_space<vmem>>, %arg3: memref<1x128xf32, #tpu.memory_space<vmem>>, %arg4: memref<32x128xf32, #tpu.memory_space<vmem>>, %arg5: memref<32x128xf32, #tpu.memory_space<vmem>>, %arg6: memref<1x128xf32, #tpu.memory_space<vmem>>, %arg7: memref<32x4xf32, #tpu.memory_space<vmem>>, %arg8: memref<1x4xf32, #tpu.memory_space<vmem>>, %arg9: memref<1x4xf32, #tpu.memory_space<vmem>>, %arg10: memref<8x128xf32, #tpu.memory_space<vmem>>, %arg11: memref<8x32xf32, #tpu.memory_space<vmem>>) attributes {dimension_semantics = [], scalar_prefetch = 0 : i64, scratch_operands = 2 : i64, tpu.core_type = #tpu.core_type<tc>} {
    %c0 = arith.constant 0 : index
    %c0_0 = arith.constant 0 : index
    %0 = vector.load %arg0[%c0, %c0_0] : memref<8x16xf32, #tpu.memory_space<vmem>>, vector<8x16xf32>
    %c0_1 = arith.constant 0 : index
    %c0_2 = arith.constant 0 : index
    %1 = vector.load %arg1[%c0_1, %c0_2] : memref<16x128xf32, #tpu.memory_space<vmem>>, vector<16x128xf32>
    %cst = arith.constant dense<0.000000e+00> : vector<8x128xf32>
    %2 = tpu.matmul %0, %1, %cst {dimension_numbers = #tpu.dot_dimension_numbers<[1], [0], [0], [1], [0, 0, 1, 1], [], []>} : vector<8x16xf32>, vector<16x128xf32>, vector<8x128xf32> -> vector<8x128xf32>
    %c0_3 = arith.constant 0 : index
    %c0_4 = arith.constant 0 : index
    %3 = vector.load %arg3[%c0_3, %c0_4] : memref<1x128xf32, #tpu.memory_space<vmem>>, vector<1x128xf32>
    %4 = vector.broadcast %3 : vector<1x128xf32> to vector<8x128xf32>
    %5 = arith.addf %2, %4 : vector<8x128xf32>
    %c0_5 = arith.constant 0 : index
    %c0_6 = arith.constant 0 : index
    %6 = vector.load %arg10[%c0_5, %c0_6] : memref<8x128xf32, #tpu.memory_space<vmem>>, vector<8x128xf32>
    tpu.vector_store %arg10[%c0_5, %c0_6], %5 {strides = array<i32>} : memref<8x128xf32, #tpu.memory_space<vmem>>, vector<8x128xf32>,
    %c0_7 = arith.constant 0 : index
    %c0_8 = arith.constant 0 : index
    %7 = vector.load %arg2[%c0_7, %c0_8] : memref<32x128xf32, #tpu.memory_space<vmem>>, vector<32x128xf32>
    %cst_9 = arith.constant 0.000000e+00 : f32
    %8 = vector.broadcast %cst_9 : f32 to vector<1x32xf32>
    %cst_10 = arith.constant 0.000000e+00 : f32
    %9 = vector.broadcast %cst_10 : f32 to vector<1x32xf32>
    %c0_i32 = arith.constant 0 : i32
    %10 = arith.index_cast %c0_i32 : i32 to index
    %c0_11 = arith.constant 0 : index
    %11 = vector.load %arg10[%10, %c0_11] : memref<8x128xf32, #tpu.memory_space<vmem>>, vector<1x128xf32>
    %cst_12 = arith.constant dense<0.000000e+00> : vector<1x128xf32>
    %12 = tpu.matmul %8, %7, %cst_12 {dimension_numbers = #tpu.dot_dimension_numbers<[1], [0], [0], [1], [0, 0, 1, 1], [], []>} : vector<1x32xf32>, vector<32x128xf32>, vector<1x128xf32> -> vector<1x128xf32>
    %13 = arith.addf %11, %12 : vector<1x128xf32>
    %14 = vector.extract_strided_slice %13 {offsets = [0, 0], sizes = [1, 32], strides = [1, 1]} : vector<1x128xf32> to vector<1x32xf32>
    %15 = arith.negf %14 : vector<1x32xf32>
    %16 = math.exp %15 : vector<1x32xf32>
    %cst_13 = arith.constant 1.000000e+00 : f32
    %17 = vector.broadcast %cst_13 : f32 to vector<1x32xf32>
    %18 = arith.addf %17, %16 : vector<1x32xf32>
    %19 = arith.divf %17, %18 : vector<1x32xf32>
    %20 = vector.extract_strided_slice %13 {offsets = [0, 32], sizes = [1, 32], strides = [1, 1]} : vector<1x128xf32> to vector<1x32xf32>
    %21 = arith.negf %20 : vector<1x32xf32>
    %22 = math.exp %21 : vector<1x32xf32>
    %cst_14 = arith.constant 1.000000e+00 : f32
    %23 = vector.broadcast %cst_14 : f32 to vector<1x32xf32>
    %24 = arith.addf %23, %22 : vector<1x32xf32>
    %25 = arith.divf %23, %24 : vector<1x32xf32>
    %26 = vector.extract_strided_slice %13 {offsets = [0, 64], sizes = [1, 32], strides = [1, 1]} : vector<1x128xf32> to vector<1x32xf32>
    %27 = math.tanh %26 : vector<1x32xf32>
    %28 = vector.extract_strided_slice %13 {offsets = [0, 96], sizes = [1, 32], strides = [1, 1]} : vector<1x128xf32> to vector<1x32xf32>
    %29 = arith.negf %28 : vector<1x32xf32>
    %30 = math.exp %29 : vector<1x32xf32>
    %cst_15 = arith.constant 1.000000e+00 : f32
    %31 = vector.broadcast %cst_15 : f32 to vector<1x32xf32>
    %32 = arith.addf %31, %30 : vector<1x32xf32>
    %33 = arith.divf %31, %32 : vector<1x32xf32>
    %34 = arith.mulf %25, %9 : vector<1x32xf32>
    %35 = arith.mulf %19, %27 : vector<1x32xf32>
    %36 = arith.addf %34, %35 : vector<1x32xf32>
    %37 = math.tanh %36 : vector<1x32xf32>
    %38 = arith.mulf %33, %37 : vector<1x32xf32>
    %39 = arith.index_cast %c0_i32 : i32 to index
    %c0_16 = arith.constant 0 : index
    %40 = vector.load %arg11[%39, %c0_16] : memref<8x32xf32, #tpu.memory_space<vmem>>, vector<1x32xf32>
    tpu.vector_store %arg11[%39, %c0_16], %38 {strides = array<i32>} : memref<8x32xf32, #tpu.memory_space<vmem>>, vector<1x32xf32>,
    %c1_i32 = arith.constant 1 : i32
    %41 = arith.index_cast %c1_i32 : i32 to index
    %c0_17 = arith.constant 0 : index
    %42 = vector.load %arg10[%41, %c0_17] : memref<8x128xf32, #tpu.memory_space<vmem>>, vector<1x128xf32>
    %cst_18 = arith.constant dense<0.000000e+00> : vector<1x128xf32>
    %43 = tpu.matmul %38, %7, %cst_18 {dimension_numbers = #tpu.dot_dimension_numbers<[1], [0], [0], [1], [0, 0, 1, 1], [], []>} : vector<1x32xf32>, vector<32x128xf32>, vector<1x128xf32> -> vector<1x128xf32>
    %44 = arith.addf %42, %43 : vector<1x128xf32>
    %45 = vector.extract_strided_slice %44 {offsets = [0, 0], sizes = [1, 32], strides = [1, 1]} : vector<1x128xf32> to vector<1x32xf32>
    %46 = arith.negf %45 : vector<1x32xf32>
    %47 = math.exp %46 : vector<1x32xf32>
    %cst_19 = arith.constant 1.000000e+00 : f32
    %48 = vector.broadcast %cst_19 : f32 to vector<1x32xf32>
    %49 = arith.addf %48, %47 : vector<1x32xf32>
    %50 = arith.divf %48, %49 : vector<1x32xf32>
    %51 = vector.extract_strided_slice %44 {offsets = [0, 32], sizes = [1, 32], strides = [1, 1]} : vector<1x128xf32> to vector<1x32xf32>
    %52 = arith.negf %51 : vector<1x32xf32>
    %53 = math.exp %52 : vector<1x32xf32>
    %cst_20 = arith.constant 1.000000e+00 : f32
    %54 = vector.broadcast %cst_20 : f32 to vector<1x32xf32>
    %55 = arith.addf %54, %53 : vector<1x32xf32>
    %56 = arith.divf %54, %55 : vector<1x32xf32>
    %57 = vector.extract_strided_slice %44 {offsets = [0, 64], sizes = [1, 32], strides = [1, 1]} : vector<1x128xf32> to vector<1x32xf32>
    %58 = math.tanh %57 : vector<1x32xf32>
    %59 = vector.extract_strided_slice %44 {offsets = [0, 96], sizes = [1, 32], strides = [1, 1]} : vector<1x128xf32> to vector<1x32xf32>
    %60 = arith.negf %59 : vector<1x32xf32>
    %61 = math.exp %60 : vector<1x32xf32>
    %cst_21 = arith.constant 1.000000e+00 : f32
    %62 = vector.broadcast %cst_21 : f32 to vector<1x32xf32>
    %63 = arith.addf %62, %61 : vector<1x32xf32>
    %64 = arith.divf %62, %63 : vector<1x32xf32>
    %65 = arith.mulf %56, %36 : vector<1x32xf32>
    %66 = arith.mulf %50, %58 : vector<1x32xf32>
    %67 = arith.addf %65, %66 : vector<1x32xf32>
    %68 = math.tanh %67 : vector<1x32xf32>
    %69 = arith.mulf %64, %68 : vector<1x32xf32>
    %70 = arith.index_cast %c1_i32 : i32 to index
    %c0_22 = arith.constant 0 : index
    %71 = vector.load %arg11[%70, %c0_22] : memref<8x32xf32, #tpu.memory_space<vmem>>, vector<1x32xf32>
    tpu.vector_store %arg11[%70, %c0_22], %69 {strides = array<i32>} : memref<8x32xf32, #tpu.memory_space<vmem>>, vector<1x32xf32>,
    %c2_i32 = arith.constant 2 : i32
    %72 = arith.index_cast %c2_i32 : i32 to index
    %c0_23 = arith.constant 0 : index
    %73 = vector.load %arg10[%72, %c0_23] : memref<8x128xf32, #tpu.memory_space<vmem>>, vector<1x128xf32>
    %cst_24 = arith.constant dense<0.000000e+00> : vector<1x128xf32>
    %74 = tpu.matmul %69, %7, %cst_24 {dimension_numbers = #tpu.dot_dimension_numbers<[1], [0], [0], [1], [0, 0, 1, 1], [], []>} : vector<1x32xf32>, vector<32x128xf32>, vector<1x128xf32> -> vector<1x128xf32>
    %75 = arith.addf %73, %74 : vector<1x128xf32>
    %76 = vector.extract_strided_slice %75 {offsets = [0, 0], sizes = [1, 32], strides = [1, 1]} : vector<1x128xf32> to vector<1x32xf32>
    %77 = arith.negf %76 : vector<1x32xf32>
    %78 = math.exp %77 : vector<1x32xf32>
    %cst_25 = arith.constant 1.000000e+00 : f32
    %79 = vector.broadcast %cst_25 : f32 to vector<1x32xf32>
    %80 = arith.addf %79, %78 : vector<1x32xf32>
    %81 = arith.divf %79, %80 : vector<1x32xf32>
    %82 = vector.extract_strided_slice %75 {offsets = [0, 32], sizes = [1, 32], strides = [1, 1]} : vector<1x128xf32> to vector<1x32xf32>
    %83 = arith.negf %82 : vector<1x32xf32>
    %84 = math.exp %83 : vector<1x32xf32>
    %cst_26 = arith.constant 1.000000e+00 : f32
    %85 = vector.broadcast %cst_26 : f32 to vector<1x32xf32>
    %86 = arith.addf %85, %84 : vector<1x32xf32>
    %87 = arith.divf %85, %86 : vector<1x32xf32>
    %88 = vector.extract_strided_slice %75 {offsets = [0, 64], sizes = [1, 32], strides = [1, 1]} : vector<1x128xf32> to vector<1x32xf32>
    %89 = math.tanh %88 : vector<1x32xf32>
    %90 = vector.extract_strided_slice %75 {offsets = [0, 96], sizes = [1, 32], strides = [1, 1]} : vector<1x128xf32> to vector<1x32xf32>
    %91 = arith.negf %90 : vector<1x32xf32>
    %92 = math.exp %91 : vector<1x32xf32>
    %cst_27 = arith.constant 1.000000e+00 : f32
    %93 = vector.broadcast %cst_27 : f32 to vector<1x32xf32>
    %94 = arith.addf %93, %92 : vector<1x32xf32>
    %95 = arith.divf %93, %94 : vector<1x32xf32>
    %96 = arith.mulf %87, %67 : vector<1x32xf32>
    %97 = arith.mulf %81, %89 : vector<1x32xf32>
    %98 = arith.addf %96, %97 : vector<1x32xf32>
    %99 = math.tanh %98 : vector<1x32xf32>
    %100 = arith.mulf %95, %99 : vector<1x32xf32>
    %101 = arith.index_cast %c2_i32 : i32 to index
    %c0_28 = arith.constant 0 : index
    %102 = vector.load %arg11[%101, %c0_28] : memref<8x32xf32, #tpu.memory_space<vmem>>, vector<1x32xf32>
    tpu.vector_store %arg11[%101, %c0_28], %100 {strides = array<i32>} : memref<8x32xf32, #tpu.memory_space<vmem>>, vector<1x32xf32>,
    %c3_i32 = arith.constant 3 : i32
    %103 = arith.index_cast %c3_i32 : i32 to index
    %c0_29 = arith.constant 0 : index
    %104 = vector.load %arg10[%103, %c0_29] : memref<8x128xf32, #tpu.memory_space<vmem>>, vector<1x128xf32>
    %cst_30 = arith.constant dense<0.000000e+00> : vector<1x128xf32>
    %105 = tpu.matmul %100, %7, %cst_30 {dimension_numbers = #tpu.dot_dimension_numbers<[1], [0], [0], [1], [0, 0, 1, 1], [], []>} : vector<1x32xf32>, vector<32x128xf32>, vector<1x128xf32> -> vector<1x128xf32>
    %106 = arith.addf %104, %105 : vector<1x128xf32>
    %107 = vector.extract_strided_slice %106 {offsets = [0, 0], sizes = [1, 32], strides = [1, 1]} : vector<1x128xf32> to vector<1x32xf32>
    %108 = arith.negf %107 : vector<1x32xf32>
    %109 = math.exp %108 : vector<1x32xf32>
    %cst_31 = arith.constant 1.000000e+00 : f32
    %110 = vector.broadcast %cst_31 : f32 to vector<1x32xf32>
    %111 = arith.addf %110, %109 : vector<1x32xf32>
    %112 = arith.divf %110, %111 : vector<1x32xf32>
    %113 = vector.extract_strided_slice %106 {offsets = [0, 32], sizes = [1, 32], strides = [1, 1]} : vector<1x128xf32> to vector<1x32xf32>
    %114 = arith.negf %113 : vector<1x32xf32>
    %115 = math.exp %114 : vector<1x32xf32>
    %cst_32 = arith.constant 1.000000e+00 : f32
    %116 = vector.broadcast %cst_32 : f32 to vector<1x32xf32>
    %117 = arith.addf %116, %115 : vector<1x32xf32>
    %118 = arith.divf %116, %117 : vector<1x32xf32>
    %119 = vector.extract_strided_slice %106 {offsets = [0, 64], sizes = [1, 32], strides = [1, 1]} : vector<1x128xf32> to vector<1x32xf32>
    %120 = math.tanh %119 : vector<1x32xf32>
    %121 = vector.extract_strided_slice %106 {offsets = [0, 96], sizes = [1, 32], strides = [1, 1]} : vector<1x128xf32> to vector<1x32xf32>
    %122 = arith.negf %121 : vector<1x32xf32>
    %123 = math.exp %122 : vector<1x32xf32>
    %cst_33 = arith.constant 1.000000e+00 : f32
    %124 = vector.broadcast %cst_33 : f32 to vector<1x32xf32>
    %125 = arith.addf %124, %123 : vector<1x32xf32>
    %126 = arith.divf %124, %125 : vector<1x32xf32>
    %127 = arith.mulf %118, %98 : vector<1x32xf32>
    %128 = arith.mulf %112, %120 : vector<1x32xf32>
    %129 = arith.addf %127, %128 : vector<1x32xf32>
    %130 = math.tanh %129 : vector<1x32xf32>
    %131 = arith.mulf %126, %130 : vector<1x32xf32>
    %132 = arith.index_cast %c3_i32 : i32 to index
    %c0_34 = arith.constant 0 : index
    %133 = vector.load %arg11[%132, %c0_34] : memref<8x32xf32, #tpu.memory_space<vmem>>, vector<1x32xf32>
    tpu.vector_store %arg11[%132, %c0_34], %131 {strides = array<i32>} : memref<8x32xf32, #tpu.memory_space<vmem>>, vector<1x32xf32>,
    %c4_i32 = arith.constant 4 : i32
    %134 = arith.index_cast %c4_i32 : i32 to index
    %c0_35 = arith.constant 0 : index
    %135 = vector.load %arg10[%134, %c0_35] : memref<8x128xf32, #tpu.memory_space<vmem>>, vector<1x128xf32>
    %cst_36 = arith.constant dense<0.000000e+00> : vector<1x128xf32>
    %136 = tpu.matmul %131, %7, %cst_36 {dimension_numbers = #tpu.dot_dimension_numbers<[1], [0], [0], [1], [0, 0, 1, 1], [], []>} : vector<1x32xf32>, vector<32x128xf32>, vector<1x128xf32> -> vector<1x128xf32>
    %137 = arith.addf %135, %136 : vector<1x128xf32>
    %138 = vector.extract_strided_slice %137 {offsets = [0, 0], sizes = [1, 32], strides = [1, 1]} : vector<1x128xf32> to vector<1x32xf32>
    %139 = arith.negf %138 : vector<1x32xf32>
    %140 = math.exp %139 : vector<1x32xf32>
    %cst_37 = arith.constant 1.000000e+00 : f32
    %141 = vector.broadcast %cst_37 : f32 to vector<1x32xf32>
    %142 = arith.addf %141, %140 : vector<1x32xf32>
    %143 = arith.divf %141, %142 : vector<1x32xf32>
    %144 = vector.extract_strided_slice %137 {offsets = [0, 32], sizes = [1, 32], strides = [1, 1]} : vector<1x128xf32> to vector<1x32xf32>
    %145 = arith.negf %144 : vector<1x32xf32>
    %146 = math.exp %145 : vector<1x32xf32>
    %cst_38 = arith.constant 1.000000e+00 : f32
    %147 = vector.broadcast %cst_38 : f32 to vector<1x32xf32>
    %148 = arith.addf %147, %146 : vector<1x32xf32>
    %149 = arith.divf %147, %148 : vector<1x32xf32>
    %150 = vector.extract_strided_slice %137 {offsets = [0, 64], sizes = [1, 32], strides = [1, 1]} : vector<1x128xf32> to vector<1x32xf32>
    %151 = math.tanh %150 : vector<1x32xf32>
    %152 = vector.extract_strided_slice %137 {offsets = [0, 96], sizes = [1, 32], strides = [1, 1]} : vector<1x128xf32> to vector<1x32xf32>
    %153 = arith.negf %152 : vector<1x32xf32>
    %154 = math.exp %153 : vector<1x32xf32>
    %cst_39 = arith.constant 1.000000e+00 : f32
    %155 = vector.broadcast %cst_39 : f32 to vector<1x32xf32>
    %156 = arith.addf %155, %154 : vector<1x32xf32>
    %157 = arith.divf %155, %156 : vector<1x32xf32>
    %158 = arith.mulf %149, %129 : vector<1x32xf32>
    %159 = arith.mulf %143, %151 : vector<1x32xf32>
    %160 = arith.addf %158, %159 : vector<1x32xf32>
    %161 = math.tanh %160 : vector<1x32xf32>
    %162 = arith.mulf %157, %161 : vector<1x32xf32>
    %163 = arith.index_cast %c4_i32 : i32 to index
    %c0_40 = arith.constant 0 : index
    %164 = vector.load %arg11[%163, %c0_40] : memref<8x32xf32, #tpu.memory_space<vmem>>, vector<1x32xf32>
    tpu.vector_store %arg11[%163, %c0_40], %162 {strides = array<i32>} : memref<8x32xf32, #tpu.memory_space<vmem>>, vector<1x32xf32>,
    %c5_i32 = arith.constant 5 : i32
    %165 = arith.index_cast %c5_i32 : i32 to index
    %c0_41 = arith.constant 0 : index
    %166 = vector.load %arg10[%165, %c0_41] : memref<8x128xf32, #tpu.memory_space<vmem>>, vector<1x128xf32>
    %cst_42 = arith.constant dense<0.000000e+00> : vector<1x128xf32>
    %167 = tpu.matmul %162, %7, %cst_42 {dimension_numbers = #tpu.dot_dimension_numbers<[1], [0], [0], [1], [0, 0, 1, 1], [], []>} : vector<1x32xf32>, vector<32x128xf32>, vector<1x128xf32> -> vector<1x128xf32>
    %168 = arith.addf %166, %167 : vector<1x128xf32>
    %169 = vector.extract_strided_slice %168 {offsets = [0, 0], sizes = [1, 32], strides = [1, 1]} : vector<1x128xf32> to vector<1x32xf32>
    %170 = arith.negf %169 : vector<1x32xf32>
    %171 = math.exp %170 : vector<1x32xf32>
    %cst_43 = arith.constant 1.000000e+00 : f32
    %172 = vector.broadcast %cst_43 : f32 to vector<1x32xf32>
    %173 = arith.addf %172, %171 : vector<1x32xf32>
    %174 = arith.divf %172, %173 : vector<1x32xf32>
    %175 = vector.extract_strided_slice %168 {offsets = [0, 32], sizes = [1, 32], strides = [1, 1]} : vector<1x128xf32> to vector<1x32xf32>
    %176 = arith.negf %175 : vector<1x32xf32>
    %177 = math.exp %176 : vector<1x32xf32>
    %cst_44 = arith.constant 1.000000e+00 : f32
    %178 = vector.broadcast %cst_44 : f32 to vector<1x32xf32>
    %179 = arith.addf %178, %177 : vector<1x32xf32>
    %180 = arith.divf %178, %179 : vector<1x32xf32>
    %181 = vector.extract_strided_slice %168 {offsets = [0, 64], sizes = [1, 32], strides = [1, 1]} : vector<1x128xf32> to vector<1x32xf32>
    %182 = math.tanh %181 : vector<1x32xf32>
    %183 = vector.extract_strided_slice %168 {offsets = [0, 96], sizes = [1, 32], strides = [1, 1]} : vector<1x128xf32> to vector<1x32xf32>
    %184 = arith.negf %183 : vector<1x32xf32>
    %185 = math.exp %184 : vector<1x32xf32>
    %cst_45 = arith.constant 1.000000e+00 : f32
    %186 = vector.broadcast %cst_45 : f32 to vector<1x32xf32>
    %187 = arith.addf %186, %185 : vector<1x32xf32>
    %188 = arith.divf %186, %187 : vector<1x32xf32>
    %189 = arith.mulf %180, %160 : vector<1x32xf32>
    %190 = arith.mulf %174, %182 : vector<1x32xf32>
    %191 = arith.addf %189, %190 : vector<1x32xf32>
    %192 = math.tanh %191 : vector<1x32xf32>
    %193 = arith.mulf %188, %192 : vector<1x32xf32>
    %194 = arith.index_cast %c5_i32 : i32 to index
    %c0_46 = arith.constant 0 : index
    %195 = vector.load %arg11[%194, %c0_46] : memref<8x32xf32, #tpu.memory_space<vmem>>, vector<1x32xf32>
    tpu.vector_store %arg11[%194, %c0_46], %193 {strides = array<i32>} : memref<8x32xf32, #tpu.memory_space<vmem>>, vector<1x32xf32>,
    %c6_i32 = arith.constant 6 : i32
    %196 = arith.index_cast %c6_i32 : i32 to index
    %c0_47 = arith.constant 0 : index
    %197 = vector.load %arg10[%196, %c0_47] : memref<8x128xf32, #tpu.memory_space<vmem>>, vector<1x128xf32>
    %cst_48 = arith.constant dense<0.000000e+00> : vector<1x128xf32>
    %198 = tpu.matmul %193, %7, %cst_48 {dimension_numbers = #tpu.dot_dimension_numbers<[1], [0], [0], [1], [0, 0, 1, 1], [], []>} : vector<1x32xf32>, vector<32x128xf32>, vector<1x128xf32> -> vector<1x128xf32>
    %199 = arith.addf %197, %198 : vector<1x128xf32>
    %200 = vector.extract_strided_slice %199 {offsets = [0, 0], sizes = [1, 32], strides = [1, 1]} : vector<1x128xf32> to vector<1x32xf32>
    %201 = arith.negf %200 : vector<1x32xf32>
    %202 = math.exp %201 : vector<1x32xf32>
    %cst_49 = arith.constant 1.000000e+00 : f32
    %203 = vector.broadcast %cst_49 : f32 to vector<1x32xf32>
    %204 = arith.addf %203, %202 : vector<1x32xf32>
    %205 = arith.divf %203, %204 : vector<1x32xf32>
    %206 = vector.extract_strided_slice %199 {offsets = [0, 32], sizes = [1, 32], strides = [1, 1]} : vector<1x128xf32> to vector<1x32xf32>
    %207 = arith.negf %206 : vector<1x32xf32>
    %208 = math.exp %207 : vector<1x32xf32>
    %cst_50 = arith.constant 1.000000e+00 : f32
    %209 = vector.broadcast %cst_50 : f32 to vector<1x32xf32>
    %210 = arith.addf %209, %208 : vector<1x32xf32>
    %211 = arith.divf %209, %210 : vector<1x32xf32>
    %212 = vector.extract_strided_slice %199 {offsets = [0, 64], sizes = [1, 32], strides = [1, 1]} : vector<1x128xf32> to vector<1x32xf32>
    %213 = math.tanh %212 : vector<1x32xf32>
    %214 = vector.extract_strided_slice %199 {offsets = [0, 96], sizes = [1, 32], strides = [1, 1]} : vector<1x128xf32> to vector<1x32xf32>
    %215 = arith.negf %214 : vector<1x32xf32>
    %216 = math.exp %215 : vector<1x32xf32>
    %cst_51 = arith.constant 1.000000e+00 : f32
    %217 = vector.broadcast %cst_51 : f32 to vector<1x32xf32>
    %218 = arith.addf %217, %216 : vector<1x32xf32>
    %219 = arith.divf %217, %218 : vector<1x32xf32>
    %220 = arith.mulf %211, %191 : vector<1x32xf32>
    %221 = arith.mulf %205, %213 : vector<1x32xf32>
    %222 = arith.addf %220, %221 : vector<1x32xf32>
    %223 = math.tanh %222 : vector<1x32xf32>
    %224 = arith.mulf %219, %223 : vector<1x32xf32>
    %225 = arith.index_cast %c6_i32 : i32 to index
    %c0_52 = arith.constant 0 : index
    %226 = vector.load %arg11[%225, %c0_52] : memref<8x32xf32, #tpu.memory_space<vmem>>, vector<1x32xf32>
    tpu.vector_store %arg11[%225, %c0_52], %224 {strides = array<i32>} : memref<8x32xf32, #tpu.memory_space<vmem>>, vector<1x32xf32>,
    %c7_i32 = arith.constant 7 : i32
    %227 = arith.index_cast %c7_i32 : i32 to index
    %c0_53 = arith.constant 0 : index
    %228 = vector.load %arg10[%227, %c0_53] : memref<8x128xf32, #tpu.memory_space<vmem>>, vector<1x128xf32>
    %cst_54 = arith.constant dense<0.000000e+00> : vector<1x128xf32>
    %229 = tpu.matmul %224, %7, %cst_54 {dimension_numbers = #tpu.dot_dimension_numbers<[1], [0], [0], [1], [0, 0, 1, 1], [], []>} : vector<1x32xf32>, vector<32x128xf32>, vector<1x128xf32> -> vector<1x128xf32>
    %230 = arith.addf %228, %229 : vector<1x128xf32>
    %231 = vector.extract_strided_slice %230 {offsets = [0, 0], sizes = [1, 32], strides = [1, 1]} : vector<1x128xf32> to vector<1x32xf32>
    %232 = arith.negf %231 : vector<1x32xf32>
    %233 = math.exp %232 : vector<1x32xf32>
    %cst_55 = arith.constant 1.000000e+00 : f32
    %234 = vector.broadcast %cst_55 : f32 to vector<1x32xf32>
    %235 = arith.addf %234, %233 : vector<1x32xf32>
    %236 = arith.divf %234, %235 : vector<1x32xf32>
    %237 = vector.extract_strided_slice %230 {offsets = [0, 32], sizes = [1, 32], strides = [1, 1]} : vector<1x128xf32> to vector<1x32xf32>
    %238 = arith.negf %237 : vector<1x32xf32>
    %239 = math.exp %238 : vector<1x32xf32>
    %cst_56 = arith.constant 1.000000e+00 : f32
    %240 = vector.broadcast %cst_56 : f32 to vector<1x32xf32>
    %241 = arith.addf %240, %239 : vector<1x32xf32>
    %242 = arith.divf %240, %241 : vector<1x32xf32>
    %243 = vector.extract_strided_slice %230 {offsets = [0, 64], sizes = [1, 32], strides = [1, 1]} : vector<1x128xf32> to vector<1x32xf32>
    %244 = math.tanh %243 : vector<1x32xf32>
    %245 = vector.extract_strided_slice %230 {offsets = [0, 96], sizes = [1, 32], strides = [1, 1]} : vector<1x128xf32> to vector<1x32xf32>
    %246 = arith.negf %245 : vector<1x32xf32>
    %247 = math.exp %246 : vector<1x32xf32>
    %cst_57 = arith.constant 1.000000e+00 : f32
    %248 = vector.broadcast %cst_57 : f32 to vector<1x32xf32>
    %249 = arith.addf %248, %247 : vector<1x32xf32>
    %250 = arith.divf %248, %249 : vector<1x32xf32>
    %251 = arith.mulf %242, %222 : vector<1x32xf32>
    %252 = arith.mulf %236, %244 : vector<1x32xf32>
    %253 = arith.addf %251, %252 : vector<1x32xf32>
    %254 = math.tanh %253 : vector<1x32xf32>
    %255 = arith.mulf %250, %254 : vector<1x32xf32>
    %256 = arith.index_cast %c7_i32 : i32 to index
    %c0_58 = arith.constant 0 : index
    %257 = vector.load %arg11[%256, %c0_58] : memref<8x32xf32, #tpu.memory_space<vmem>>, vector<1x32xf32>
    tpu.vector_store %arg11[%256, %c0_58], %255 {strides = array<i32>} : memref<8x32xf32, #tpu.memory_space<vmem>>, vector<1x32xf32>,
    %c8_i32 = arith.constant 8 : i32
    %c0_59 = arith.constant 0 : index
    %c0_60 = arith.constant 0 : index
    %258 = vector.load %arg11[%c0_59, %c0_60] : memref<8x32xf32, #tpu.memory_space<vmem>>, vector<8x32xf32>
    %c0_61 = arith.constant 0 : index
    %c0_62 = arith.constant 0 : index
    %259 = vector.load %arg4[%c0_61, %c0_62] : memref<32x128xf32, #tpu.memory_space<vmem>>, vector<32x128xf32>
    %cst_63 = arith.constant dense<0.000000e+00> : vector<8x128xf32>
    %260 = tpu.matmul %258, %259, %cst_63 {dimension_numbers = #tpu.dot_dimension_numbers<[1], [0], [0], [1], [0, 0, 1, 1], [], []>} : vector<8x32xf32>, vector<32x128xf32>, vector<8x128xf32> -> vector<8x128xf32>
    %c0_64 = arith.constant 0 : index
    %c0_65 = arith.constant 0 : index
    %261 = vector.load %arg6[%c0_64, %c0_65] : memref<1x128xf32, #tpu.memory_space<vmem>>, vector<1x128xf32>
    %262 = vector.broadcast %261 : vector<1x128xf32> to vector<8x128xf32>
    %263 = arith.addf %260, %262 : vector<8x128xf32>
    %c0_66 = arith.constant 0 : index
    %c0_67 = arith.constant 0 : index
    %264 = vector.load %arg10[%c0_66, %c0_67] : memref<8x128xf32, #tpu.memory_space<vmem>>, vector<8x128xf32>
    tpu.vector_store %arg10[%c0_66, %c0_67], %263 {strides = array<i32>} : memref<8x128xf32, #tpu.memory_space<vmem>>, vector<8x128xf32>,
    %c0_68 = arith.constant 0 : index
    %c0_69 = arith.constant 0 : index
    %265 = vector.load %arg5[%c0_68, %c0_69] : memref<32x128xf32, #tpu.memory_space<vmem>>, vector<32x128xf32>
    %cst_70 = arith.constant 0.000000e+00 : f32
    %266 = vector.broadcast %cst_70 : f32 to vector<1x32xf32>
    %cst_71 = arith.constant 0.000000e+00 : f32
    %267 = vector.broadcast %cst_71 : f32 to vector<1x32xf32>
    %c0_i32_72 = arith.constant 0 : i32
    %268 = arith.index_cast %c0_i32_72 : i32 to index
    %c0_73 = arith.constant 0 : index
    %269 = vector.load %arg10[%268, %c0_73] : memref<8x128xf32, #tpu.memory_space<vmem>>, vector<1x128xf32>
    %cst_74 = arith.constant dense<0.000000e+00> : vector<1x128xf32>
    %270 = tpu.matmul %266, %265, %cst_74 {dimension_numbers = #tpu.dot_dimension_numbers<[1], [0], [0], [1], [0, 0, 1, 1], [], []>} : vector<1x32xf32>, vector<32x128xf32>, vector<1x128xf32> -> vector<1x128xf32>
    %271 = arith.addf %269, %270 : vector<1x128xf32>
    %272 = vector.extract_strided_slice %271 {offsets = [0, 0], sizes = [1, 32], strides = [1, 1]} : vector<1x128xf32> to vector<1x32xf32>
    %273 = arith.negf %272 : vector<1x32xf32>
    %274 = math.exp %273 : vector<1x32xf32>
    %cst_75 = arith.constant 1.000000e+00 : f32
    %275 = vector.broadcast %cst_75 : f32 to vector<1x32xf32>
    %276 = arith.addf %275, %274 : vector<1x32xf32>
    %277 = arith.divf %275, %276 : vector<1x32xf32>
    %278 = vector.extract_strided_slice %271 {offsets = [0, 32], sizes = [1, 32], strides = [1, 1]} : vector<1x128xf32> to vector<1x32xf32>
    %279 = arith.negf %278 : vector<1x32xf32>
    %280 = math.exp %279 : vector<1x32xf32>
    %cst_76 = arith.constant 1.000000e+00 : f32
    %281 = vector.broadcast %cst_76 : f32 to vector<1x32xf32>
    %282 = arith.addf %281, %280 : vector<1x32xf32>
    %283 = arith.divf %281, %282 : vector<1x32xf32>
    %284 = vector.extract_strided_slice %271 {offsets = [0, 64], sizes = [1, 32], strides = [1, 1]} : vector<1x128xf32> to vector<1x32xf32>
    %285 = math.tanh %284 : vector<1x32xf32>
    %286 = vector.extract_strided_slice %271 {offsets = [0, 96], sizes = [1, 32], strides = [1, 1]} : vector<1x128xf32> to vector<1x32xf32>
    %287 = arith.negf %286 : vector<1x32xf32>
    %288 = math.exp %287 : vector<1x32xf32>
    %cst_77 = arith.constant 1.000000e+00 : f32
    %289 = vector.broadcast %cst_77 : f32 to vector<1x32xf32>
    %290 = arith.addf %289, %288 : vector<1x32xf32>
    %291 = arith.divf %289, %290 : vector<1x32xf32>
    %292 = arith.mulf %283, %267 : vector<1x32xf32>
    %293 = arith.mulf %277, %285 : vector<1x32xf32>
    %294 = arith.addf %292, %293 : vector<1x32xf32>
    %295 = math.tanh %294 : vector<1x32xf32>
    %296 = arith.mulf %291, %295 : vector<1x32xf32>
    %c1_i32_78 = arith.constant 1 : i32
    %297 = arith.index_cast %c1_i32_78 : i32 to index
    %c0_79 = arith.constant 0 : index
    %298 = vector.load %arg10[%297, %c0_79] : memref<8x128xf32, #tpu.memory_space<vmem>>, vector<1x128xf32>
    %cst_80 = arith.constant dense<0.000000e+00> : vector<1x128xf32>
    %299 = tpu.matmul %296, %265, %cst_80 {dimension_numbers = #tpu.dot_dimension_numbers<[1], [0], [0], [1], [0, 0, 1, 1], [], []>} : vector<1x32xf32>, vector<32x128xf32>, vector<1x128xf32> -> vector<1x128xf32>
    %300 = arith.addf %298, %299 : vector<1x128xf32>
    %301 = vector.extract_strided_slice %300 {offsets = [0, 0], sizes = [1, 32], strides = [1, 1]} : vector<1x128xf32> to vector<1x32xf32>
    %302 = arith.negf %301 : vector<1x32xf32>
    %303 = math.exp %302 : vector<1x32xf32>
    %cst_81 = arith.constant 1.000000e+00 : f32
    %304 = vector.broadcast %cst_81 : f32 to vector<1x32xf32>
    %305 = arith.addf %304, %303 : vector<1x32xf32>
    %306 = arith.divf %304, %305 : vector<1x32xf32>
    %307 = vector.extract_strided_slice %300 {offsets = [0, 32], sizes = [1, 32], strides = [1, 1]} : vector<1x128xf32> to vector<1x32xf32>
    %308 = arith.negf %307 : vector<1x32xf32>
    %309 = math.exp %308 : vector<1x32xf32>
    %cst_82 = arith.constant 1.000000e+00 : f32
    %310 = vector.broadcast %cst_82 : f32 to vector<1x32xf32>
    %311 = arith.addf %310, %309 : vector<1x32xf32>
    %312 = arith.divf %310, %311 : vector<1x32xf32>
    %313 = vector.extract_strided_slice %300 {offsets = [0, 64], sizes = [1, 32], strides = [1, 1]} : vector<1x128xf32> to vector<1x32xf32>
    %314 = math.tanh %313 : vector<1x32xf32>
    %315 = vector.extract_strided_slice %300 {offsets = [0, 96], sizes = [1, 32], strides = [1, 1]} : vector<1x128xf32> to vector<1x32xf32>
    %316 = arith.negf %315 : vector<1x32xf32>
    %317 = math.exp %316 : vector<1x32xf32>
    %cst_83 = arith.constant 1.000000e+00 : f32
    %318 = vector.broadcast %cst_83 : f32 to vector<1x32xf32>
    %319 = arith.addf %318, %317 : vector<1x32xf32>
    %320 = arith.divf %318, %319 : vector<1x32xf32>
    %321 = arith.mulf %312, %294 : vector<1x32xf32>
    %322 = arith.mulf %306, %314 : vector<1x32xf32>
    %323 = arith.addf %321, %322 : vector<1x32xf32>
    %324 = math.tanh %323 : vector<1x32xf32>
    %325 = arith.mulf %320, %324 : vector<1x32xf32>
    %c2_i32_84 = arith.constant 2 : i32
    %326 = arith.index_cast %c2_i32_84 : i32 to index
    %c0_85 = arith.constant 0 : index
    %327 = vector.load %arg10[%326, %c0_85] : memref<8x128xf32, #tpu.memory_space<vmem>>, vector<1x128xf32>
    %cst_86 = arith.constant dense<0.000000e+00> : vector<1x128xf32>
    %328 = tpu.matmul %325, %265, %cst_86 {dimension_numbers = #tpu.dot_dimension_numbers<[1], [0], [0], [1], [0, 0, 1, 1], [], []>} : vector<1x32xf32>, vector<32x128xf32>, vector<1x128xf32> -> vector<1x128xf32>
    %329 = arith.addf %327, %328 : vector<1x128xf32>
    %330 = vector.extract_strided_slice %329 {offsets = [0, 0], sizes = [1, 32], strides = [1, 1]} : vector<1x128xf32> to vector<1x32xf32>
    %331 = arith.negf %330 : vector<1x32xf32>
    %332 = math.exp %331 : vector<1x32xf32>
    %cst_87 = arith.constant 1.000000e+00 : f32
    %333 = vector.broadcast %cst_87 : f32 to vector<1x32xf32>
    %334 = arith.addf %333, %332 : vector<1x32xf32>
    %335 = arith.divf %333, %334 : vector<1x32xf32>
    %336 = vector.extract_strided_slice %329 {offsets = [0, 32], sizes = [1, 32], strides = [1, 1]} : vector<1x128xf32> to vector<1x32xf32>
    %337 = arith.negf %336 : vector<1x32xf32>
    %338 = math.exp %337 : vector<1x32xf32>
    %cst_88 = arith.constant 1.000000e+00 : f32
    %339 = vector.broadcast %cst_88 : f32 to vector<1x32xf32>
    %340 = arith.addf %339, %338 : vector<1x32xf32>
    %341 = arith.divf %339, %340 : vector<1x32xf32>
    %342 = vector.extract_strided_slice %329 {offsets = [0, 64], sizes = [1, 32], strides = [1, 1]} : vector<1x128xf32> to vector<1x32xf32>
    %343 = math.tanh %342 : vector<1x32xf32>
    %344 = vector.extract_strided_slice %329 {offsets = [0, 96], sizes = [1, 32], strides = [1, 1]} : vector<1x128xf32> to vector<1x32xf32>
    %345 = arith.negf %344 : vector<1x32xf32>
    %346 = math.exp %345 : vector<1x32xf32>
    %cst_89 = arith.constant 1.000000e+00 : f32
    %347 = vector.broadcast %cst_89 : f32 to vector<1x32xf32>
    %348 = arith.addf %347, %346 : vector<1x32xf32>
    %349 = arith.divf %347, %348 : vector<1x32xf32>
    %350 = arith.mulf %341, %323 : vector<1x32xf32>
    %351 = arith.mulf %335, %343 : vector<1x32xf32>
    %352 = arith.addf %350, %351 : vector<1x32xf32>
    %353 = math.tanh %352 : vector<1x32xf32>
    %354 = arith.mulf %349, %353 : vector<1x32xf32>
    %c3_i32_90 = arith.constant 3 : i32
    %355 = arith.index_cast %c3_i32_90 : i32 to index
    %c0_91 = arith.constant 0 : index
    %356 = vector.load %arg10[%355, %c0_91] : memref<8x128xf32, #tpu.memory_space<vmem>>, vector<1x128xf32>
    %cst_92 = arith.constant dense<0.000000e+00> : vector<1x128xf32>
    %357 = tpu.matmul %354, %265, %cst_92 {dimension_numbers = #tpu.dot_dimension_numbers<[1], [0], [0], [1], [0, 0, 1, 1], [], []>} : vector<1x32xf32>, vector<32x128xf32>, vector<1x128xf32> -> vector<1x128xf32>
    %358 = arith.addf %356, %357 : vector<1x128xf32>
    %359 = vector.extract_strided_slice %358 {offsets = [0, 0], sizes = [1, 32], strides = [1, 1]} : vector<1x128xf32> to vector<1x32xf32>
    %360 = arith.negf %359 : vector<1x32xf32>
    %361 = math.exp %360 : vector<1x32xf32>
    %cst_93 = arith.constant 1.000000e+00 : f32
    %362 = vector.broadcast %cst_93 : f32 to vector<1x32xf32>
    %363 = arith.addf %362, %361 : vector<1x32xf32>
    %364 = arith.divf %362, %363 : vector<1x32xf32>
    %365 = vector.extract_strided_slice %358 {offsets = [0, 32], sizes = [1, 32], strides = [1, 1]} : vector<1x128xf32> to vector<1x32xf32>
    %366 = arith.negf %365 : vector<1x32xf32>
    %367 = math.exp %366 : vector<1x32xf32>
    %cst_94 = arith.constant 1.000000e+00 : f32
    %368 = vector.broadcast %cst_94 : f32 to vector<1x32xf32>
    %369 = arith.addf %368, %367 : vector<1x32xf32>
    %370 = arith.divf %368, %369 : vector<1x32xf32>
    %371 = vector.extract_strided_slice %358 {offsets = [0, 64], sizes = [1, 32], strides = [1, 1]} : vector<1x128xf32> to vector<1x32xf32>
    %372 = math.tanh %371 : vector<1x32xf32>
    %373 = vector.extract_strided_slice %358 {offsets = [0, 96], sizes = [1, 32], strides = [1, 1]} : vector<1x128xf32> to vector<1x32xf32>
    %374 = arith.negf %373 : vector<1x32xf32>
    %375 = math.exp %374 : vector<1x32xf32>
    %cst_95 = arith.constant 1.000000e+00 : f32
    %376 = vector.broadcast %cst_95 : f32 to vector<1x32xf32>
    %377 = arith.addf %376, %375 : vector<1x32xf32>
    %378 = arith.divf %376, %377 : vector<1x32xf32>
    %379 = arith.mulf %370, %352 : vector<1x32xf32>
    %380 = arith.mulf %364, %372 : vector<1x32xf32>
    %381 = arith.addf %379, %380 : vector<1x32xf32>
    %382 = math.tanh %381 : vector<1x32xf32>
    %383 = arith.mulf %378, %382 : vector<1x32xf32>
    %c4_i32_96 = arith.constant 4 : i32
    %384 = arith.index_cast %c4_i32_96 : i32 to index
    %c0_97 = arith.constant 0 : index
    %385 = vector.load %arg10[%384, %c0_97] : memref<8x128xf32, #tpu.memory_space<vmem>>, vector<1x128xf32>
    %cst_98 = arith.constant dense<0.000000e+00> : vector<1x128xf32>
    %386 = tpu.matmul %383, %265, %cst_98 {dimension_numbers = #tpu.dot_dimension_numbers<[1], [0], [0], [1], [0, 0, 1, 1], [], []>} : vector<1x32xf32>, vector<32x128xf32>, vector<1x128xf32> -> vector<1x128xf32>
    %387 = arith.addf %385, %386 : vector<1x128xf32>
    %388 = vector.extract_strided_slice %387 {offsets = [0, 0], sizes = [1, 32], strides = [1, 1]} : vector<1x128xf32> to vector<1x32xf32>
    %389 = arith.negf %388 : vector<1x32xf32>
    %390 = math.exp %389 : vector<1x32xf32>
    %cst_99 = arith.constant 1.000000e+00 : f32
    %391 = vector.broadcast %cst_99 : f32 to vector<1x32xf32>
    %392 = arith.addf %391, %390 : vector<1x32xf32>
    %393 = arith.divf %391, %392 : vector<1x32xf32>
    %394 = vector.extract_strided_slice %387 {offsets = [0, 32], sizes = [1, 32], strides = [1, 1]} : vector<1x128xf32> to vector<1x32xf32>
    %395 = arith.negf %394 : vector<1x32xf32>
    %396 = math.exp %395 : vector<1x32xf32>
    %cst_100 = arith.constant 1.000000e+00 : f32
    %397 = vector.broadcast %cst_100 : f32 to vector<1x32xf32>
    %398 = arith.addf %397, %396 : vector<1x32xf32>
    %399 = arith.divf %397, %398 : vector<1x32xf32>
    %400 = vector.extract_strided_slice %387 {offsets = [0, 64], sizes = [1, 32], strides = [1, 1]} : vector<1x128xf32> to vector<1x32xf32>
    %401 = math.tanh %400 : vector<1x32xf32>
    %402 = vector.extract_strided_slice %387 {offsets = [0, 96], sizes = [1, 32], strides = [1, 1]} : vector<1x128xf32> to vector<1x32xf32>
    %403 = arith.negf %402 : vector<1x32xf32>
    %404 = math.exp %403 : vector<1x32xf32>
    %cst_101 = arith.constant 1.000000e+00 : f32
    %405 = vector.broadcast %cst_101 : f32 to vector<1x32xf32>
    %406 = arith.addf %405, %404 : vector<1x32xf32>
    %407 = arith.divf %405, %406 : vector<1x32xf32>
    %408 = arith.mulf %399, %381 : vector<1x32xf32>
    %409 = arith.mulf %393, %401 : vector<1x32xf32>
    %410 = arith.addf %408, %409 : vector<1x32xf32>
    %411 = math.tanh %410 : vector<1x32xf32>
    %412 = arith.mulf %407, %411 : vector<1x32xf32>
    %c5_i32_102 = arith.constant 5 : i32
    %413 = arith.index_cast %c5_i32_102 : i32 to index
    %c0_103 = arith.constant 0 : index
    %414 = vector.load %arg10[%413, %c0_103] : memref<8x128xf32, #tpu.memory_space<vmem>>, vector<1x128xf32>
    %cst_104 = arith.constant dense<0.000000e+00> : vector<1x128xf32>
    %415 = tpu.matmul %412, %265, %cst_104 {dimension_numbers = #tpu.dot_dimension_numbers<[1], [0], [0], [1], [0, 0, 1, 1], [], []>} : vector<1x32xf32>, vector<32x128xf32>, vector<1x128xf32> -> vector<1x128xf32>
    %416 = arith.addf %414, %415 : vector<1x128xf32>
    %417 = vector.extract_strided_slice %416 {offsets = [0, 0], sizes = [1, 32], strides = [1, 1]} : vector<1x128xf32> to vector<1x32xf32>
    %418 = arith.negf %417 : vector<1x32xf32>
    %419 = math.exp %418 : vector<1x32xf32>
    %cst_105 = arith.constant 1.000000e+00 : f32
    %420 = vector.broadcast %cst_105 : f32 to vector<1x32xf32>
    %421 = arith.addf %420, %419 : vector<1x32xf32>
    %422 = arith.divf %420, %421 : vector<1x32xf32>
    %423 = vector.extract_strided_slice %416 {offsets = [0, 32], sizes = [1, 32], strides = [1, 1]} : vector<1x128xf32> to vector<1x32xf32>
    %424 = arith.negf %423 : vector<1x32xf32>
    %425 = math.exp %424 : vector<1x32xf32>
    %cst_106 = arith.constant 1.000000e+00 : f32
    %426 = vector.broadcast %cst_106 : f32 to vector<1x32xf32>
    %427 = arith.addf %426, %425 : vector<1x32xf32>
    %428 = arith.divf %426, %427 : vector<1x32xf32>
    %429 = vector.extract_strided_slice %416 {offsets = [0, 64], sizes = [1, 32], strides = [1, 1]} : vector<1x128xf32> to vector<1x32xf32>
    %430 = math.tanh %429 : vector<1x32xf32>
    %431 = vector.extract_strided_slice %416 {offsets = [0, 96], sizes = [1, 32], strides = [1, 1]} : vector<1x128xf32> to vector<1x32xf32>
    %432 = arith.negf %431 : vector<1x32xf32>
    %433 = math.exp %432 : vector<1x32xf32>
    %cst_107 = arith.constant 1.000000e+00 : f32
    %434 = vector.broadcast %cst_107 : f32 to vector<1x32xf32>
    %435 = arith.addf %434, %433 : vector<1x32xf32>
    %436 = arith.divf %434, %435 : vector<1x32xf32>
    %437 = arith.mulf %428, %410 : vector<1x32xf32>
    %438 = arith.mulf %422, %430 : vector<1x32xf32>
    %439 = arith.addf %437, %438 : vector<1x32xf32>
    %440 = math.tanh %439 : vector<1x32xf32>
    %441 = arith.mulf %436, %440 : vector<1x32xf32>
    %c6_i32_108 = arith.constant 6 : i32
    %442 = arith.index_cast %c6_i32_108 : i32 to index
    %c0_109 = arith.constant 0 : index
    %443 = vector.load %arg10[%442, %c0_109] : memref<8x128xf32, #tpu.memory_space<vmem>>, vector<1x128xf32>
    %cst_110 = arith.constant dense<0.000000e+00> : vector<1x128xf32>
    %444 = tpu.matmul %441, %265, %cst_110 {dimension_numbers = #tpu.dot_dimension_numbers<[1], [0], [0], [1], [0, 0, 1, 1], [], []>} : vector<1x32xf32>, vector<32x128xf32>, vector<1x128xf32> -> vector<1x128xf32>
    %445 = arith.addf %443, %444 : vector<1x128xf32>
    %446 = vector.extract_strided_slice %445 {offsets = [0, 0], sizes = [1, 32], strides = [1, 1]} : vector<1x128xf32> to vector<1x32xf32>
    %447 = arith.negf %446 : vector<1x32xf32>
    %448 = math.exp %447 : vector<1x32xf32>
    %cst_111 = arith.constant 1.000000e+00 : f32
    %449 = vector.broadcast %cst_111 : f32 to vector<1x32xf32>
    %450 = arith.addf %449, %448 : vector<1x32xf32>
    %451 = arith.divf %449, %450 : vector<1x32xf32>
    %452 = vector.extract_strided_slice %445 {offsets = [0, 32], sizes = [1, 32], strides = [1, 1]} : vector<1x128xf32> to vector<1x32xf32>
    %453 = arith.negf %452 : vector<1x32xf32>
    %454 = math.exp %453 : vector<1x32xf32>
    %cst_112 = arith.constant 1.000000e+00 : f32
    %455 = vector.broadcast %cst_112 : f32 to vector<1x32xf32>
    %456 = arith.addf %455, %454 : vector<1x32xf32>
    %457 = arith.divf %455, %456 : vector<1x32xf32>
    %458 = vector.extract_strided_slice %445 {offsets = [0, 64], sizes = [1, 32], strides = [1, 1]} : vector<1x128xf32> to vector<1x32xf32>
    %459 = math.tanh %458 : vector<1x32xf32>
    %460 = vector.extract_strided_slice %445 {offsets = [0, 96], sizes = [1, 32], strides = [1, 1]} : vector<1x128xf32> to vector<1x32xf32>
    %461 = arith.negf %460 : vector<1x32xf32>
    %462 = math.exp %461 : vector<1x32xf32>
    %cst_113 = arith.constant 1.000000e+00 : f32
    %463 = vector.broadcast %cst_113 : f32 to vector<1x32xf32>
    %464 = arith.addf %463, %462 : vector<1x32xf32>
    %465 = arith.divf %463, %464 : vector<1x32xf32>
    %466 = arith.mulf %457, %439 : vector<1x32xf32>
    %467 = arith.mulf %451, %459 : vector<1x32xf32>
    %468 = arith.addf %466, %467 : vector<1x32xf32>
    %469 = math.tanh %468 : vector<1x32xf32>
    %470 = arith.mulf %465, %469 : vector<1x32xf32>
    %c7_i32_114 = arith.constant 7 : i32
    %471 = arith.index_cast %c7_i32_114 : i32 to index
    %c0_115 = arith.constant 0 : index
    %472 = vector.load %arg10[%471, %c0_115] : memref<8x128xf32, #tpu.memory_space<vmem>>, vector<1x128xf32>
    %cst_116 = arith.constant dense<0.000000e+00> : vector<1x128xf32>
    %473 = tpu.matmul %470, %265, %cst_116 {dimension_numbers = #tpu.dot_dimension_numbers<[1], [0], [0], [1], [0, 0, 1, 1], [], []>} : vector<1x32xf32>, vector<32x128xf32>, vector<1x128xf32> -> vector<1x128xf32>
    %474 = arith.addf %472, %473 : vector<1x128xf32>
    %475 = vector.extract_strided_slice %474 {offsets = [0, 0], sizes = [1, 32], strides = [1, 1]} : vector<1x128xf32> to vector<1x32xf32>
    %476 = arith.negf %475 : vector<1x32xf32>
    %477 = math.exp %476 : vector<1x32xf32>
    %cst_117 = arith.constant 1.000000e+00 : f32
    %478 = vector.broadcast %cst_117 : f32 to vector<1x32xf32>
    %479 = arith.addf %478, %477 : vector<1x32xf32>
    %480 = arith.divf %478, %479 : vector<1x32xf32>
    %481 = vector.extract_strided_slice %474 {offsets = [0, 32], sizes = [1, 32], strides = [1, 1]} : vector<1x128xf32> to vector<1x32xf32>
    %482 = arith.negf %481 : vector<1x32xf32>
    %483 = math.exp %482 : vector<1x32xf32>
    %cst_118 = arith.constant 1.000000e+00 : f32
    %484 = vector.broadcast %cst_118 : f32 to vector<1x32xf32>
    %485 = arith.addf %484, %483 : vector<1x32xf32>
    %486 = arith.divf %484, %485 : vector<1x32xf32>
    %487 = vector.extract_strided_slice %474 {offsets = [0, 64], sizes = [1, 32], strides = [1, 1]} : vector<1x128xf32> to vector<1x32xf32>
    %488 = math.tanh %487 : vector<1x32xf32>
    %489 = vector.extract_strided_slice %474 {offsets = [0, 96], sizes = [1, 32], strides = [1, 1]} : vector<1x128xf32> to vector<1x32xf32>
    %490 = arith.negf %489 : vector<1x32xf32>
    %491 = math.exp %490 : vector<1x32xf32>
    %cst_119 = arith.constant 1.000000e+00 : f32
    %492 = vector.broadcast %cst_119 : f32 to vector<1x32xf32>
    %493 = arith.addf %492, %491 : vector<1x32xf32>
    %494 = arith.divf %492, %493 : vector<1x32xf32>
    %495 = arith.mulf %486, %468 : vector<1x32xf32>
    %496 = arith.mulf %480, %488 : vector<1x32xf32>
    %497 = arith.addf %495, %496 : vector<1x32xf32>
    %498 = math.tanh %497 : vector<1x32xf32>
    %499 = arith.mulf %494, %498 : vector<1x32xf32>
    %c8_i32_120 = arith.constant 8 : i32
    %c0_121 = arith.constant 0 : index
    %c0_122 = arith.constant 0 : index
    %500 = vector.load %arg7[%c0_121, %c0_122] : memref<32x4xf32, #tpu.memory_space<vmem>>, vector<32x4xf32>
    %cst_123 = arith.constant dense<0.000000e+00> : vector<1x4xf32>
    %501 = tpu.matmul %499, %500, %cst_123 {dimension_numbers = #tpu.dot_dimension_numbers<[1], [0], [0], [1], [0, 0, 1, 1], [], []>} : vector<1x32xf32>, vector<32x4xf32>, vector<1x4xf32> -> vector<1x4xf32>
    %c0_124 = arith.constant 0 : index
    %c0_125 = arith.constant 0 : index
    %502 = vector.load %arg8[%c0_124, %c0_125] : memref<1x4xf32, #tpu.memory_space<vmem>>, vector<1x4xf32>
    %503 = arith.addf %501, %502 : vector<1x4xf32>
    %c0_126 = arith.constant 0 : index
    %c0_127 = arith.constant 0 : index
    %504 = vector.load %arg9[%c0_126, %c0_127] : memref<1x4xf32, #tpu.memory_space<vmem>>, vector<1x4xf32>
    tpu.vector_store %arg9[%c0_126, %c0_127], %503 {strides = array<i32>} : memref<1x4xf32, #tpu.memory_space<vmem>>, vector<1x4xf32>,
    return
  }
}

</mosaic_0001>

<llo_original>
// kernel: lstm_classifier_forward.1
$region0: #{lstm_classifier_forward.1}
  #allocation0 [shape = 'u32[]', space=smem, size = 0x4, offset = 0x4, fixed_abs, tag = 'smem constant byte address 0x4 - core index']
  #allocation1 [shape = 'u32[144,128]{1,0:T(1,128)}', space=vmem, size = 0x12000, scoped, tag = 'internal scratch']
  #allocation2 [shape = 'f32[8,128]{1,0:T(8,128)}', space=vmem, size = 0x1000, scoped, tag = 'scratch operand']
  #allocation3 [shape = 'f32[8,32]{1,0:T(8,128)}', space=vmem, size = 0x1000, scoped, tag = 'scratch operand']
  %s0 = inlined_call_operand.vmem [shape: f32[8,16], index: 0, kind: input, shape index: {}]
  %s1 = inlined_call_operand.hbm [shape: f32[16,128], index: 1, kind: input, shape index: {}]
  %s2 = inlined_call_operand.vmem [shape: f32[32,128], index: 2, kind: input, shape index: {}]
  %s3 = inlined_call_operand.vmem [shape: f32[1,128], index: 3, kind: input, shape index: {}]
  %s4 = inlined_call_operand.hbm [shape: f32[32,128], index: 4, kind: input, shape index: {}]
  %s5 = inlined_call_operand.hbm [shape: f32[32,128], index: 5, kind: input, shape index: {}]
  %s6 = inlined_call_operand.vmem [shape: f32[1,128], index: 6, kind: input, shape index: {}]
  %s7 = inlined_call_operand.vmem [shape: f32[32,4], index: 7, kind: input, shape index: {}]
  %s8 = inlined_call_operand.hbm [shape: f32[1,4], index: 8, kind: input, shape index: {}]
  %s9 = inlined_call_operand.hbm [shape: f32[1,4], index: 9, kind: output, shape index: {}]
  %s10 = sld [smem:[#allocation0]]
  $region62: #{lstm_classifier_forward.1} parent=0
    _
  %s12 = ssub.s32 1, %s10
  %s13 = scalar_select 0, %s12, %s10
  $region1: #{lstm_classifier_forward.1} parent=0
    #allocation4 [shape = 'u8[8192]{0}', space=vmem, size = 0x2000, scoped, tag = 'input window, operand 1, single buffered']
    #allocation5 [shape = 's32[1]{0}', space=sflag, size = 0x4, scoped, tag = 'scoped memory for lstm_classifier_forward.1']
    #allocation6 [shape = 's32[1]{0}', space=sflag, size = 0x4, scoped, tag = 'scoped memory for lstm_classifier_forward.1']
    #allocation7 [shape = 'u8[16384]{0}', space=vmem, size = 0x4000, scoped, tag = 'input window, operand 4, single buffered']
    #allocation8 [shape = 's32[1]{0}', space=sflag, size = 0x4, scoped, tag = 'scoped memory for lstm_classifier_forward.1']
    #allocation9 [shape = 'u8[16384]{0}', space=vmem, size = 0x4000, scoped, tag = 'input window, operand 5, single buffered']
    #allocation10 [shape = 'u8[512]{0}', space=vmem, size = 0x400, scoped, tag = 'input window, operand 8, single buffered']
    #allocation11 [shape = 's32[1]{0}', space=sflag, size = 0x4, scoped, tag = 'scoped memory for lstm_classifier_forward.1']
    #allocation12 [shape = 'u8[512]{0}', space=vmem, size = 0x400, scoped, tag = 'output window, operand 0, single buffered']
    %14 = vsyncpa [#allocation5], 0
    %15 = vsyncpa [#allocation8], 0
    %16 = vsyncpa [#allocation11], 0
    %17 = vsyncpa [#allocation6], 0
    // Predicated region
    $region2: #{lstm_classifier_forward.1} parent=1 // pred_check
      _
    $region3: #{lstm_classifier_forward.1} parent=1 // pred_check_branch
      %19 = sbr.rel (0) target = $region5
    $region4: #{lstm_classifier_forward.1} parent=1 // pred_region
      _
    $region5: #{lstm_classifier_forward.1} parent=1 // pred_fallthru
      _
    // Predicated region
    $region6: #{lstm_classifier_forward.1} parent=1 // pred_check
      _
    $region7: #{lstm_classifier_forward.1} parent=1 // pred_check_branch
      %21 = sbr.rel (0) target = $region9
    $region8: #{lstm_classifier_forward.1} parent=1 // pred_region
      %s23 = ssub.s32 256, 256
      %24 = vsyncadd [#allocation5], %s23
      %s25 = sshll.u32 [#allocation4], 4
      %s26 = int_to_ptr.vmem [resolvable:$true] %s25
      %31 = dma.hbm_to_vmem [thread:$0]  %s1, 256, %s26, [#allocation5], 128, 128, 8
    $region9: #{lstm_classifier_forward.1} parent=1 // pred_fallthru
      _
    // Predicated region
    $region10: #{lstm_classifier_forward.1} parent=1 // pred_check
      _
    $region11: #{lstm_classifier_forward.1} parent=1 // pred_check_branch
      %33 = sbr.rel (0) target = $region13
    $region12: #{lstm_classifier_forward.1} parent=1 // pred_region
      _
    $region13: #{lstm_classifier_forward.1} parent=1 // pred_fallthru
      _
    // Predicated region
    $region14: #{lstm_classifier_forward.1} parent=1 // pred_check
      _
    $region15: #{lstm_classifier_forward.1} parent=1 // pred_check_branch
      %35 = sbr.rel (0) target = $region17
    $region16: #{lstm_classifier_forward.1} parent=1 // pred_region
      _
    $region17: #{lstm_classifier_forward.1} parent=1 // pred_fallthru
      _
    // Predicated region
    $region18: #{lstm_classifier_forward.1} parent=1 // pred_check
      _
    $region19: #{lstm_classifier_forward.1} parent=1 // pred_check_branch
      %37 = sbr.rel (0) target = $region21
    $region20: #{lstm_classifier_forward.1} parent=1 // pred_region
      %s39 = ssub.s32 512, 512
      %40 = vsyncadd [#allocation8], %s39
      %s41 = sshll.u32 [#allocation7], 4
      %s42 = int_to_ptr.vmem [resolvable:$true] %s41
      %47 = dma.hbm_to_vmem [thread:$0]  %s4, 512, %s42, [#allocation8], 128, 128, 8
    $region21: #{lstm_classifier_forward.1} parent=1 // pred_fallthru
      _
    // Predicated region
    $region22: #{lstm_classifier_forward.1} parent=1 // pred_check
      _
    $region23: #{lstm_classifier_forward.1} parent=1 // pred_check_branch
      %49 = sbr.rel (0) target = $region25
    $region24: #{lstm_classifier_forward.1} parent=1 // pred_region
      %s51 = ssub.s32 512, 512
      %52 = vsyncadd [#allocation8], %s51
      %s53 = sshll.u32 [#allocation9], 4
      %s54 = int_to_ptr.vmem [resolvable:$true] %s53
      %59 = dma.hbm_to_vmem [thread:$0]  %s5, 512, %s54, [#allocation8], 128, 128, 8
    $region25: #{lstm_classifier_forward.1} parent=1 // pred_fallthru
      _
    // Predicated region
    $region26: #{lstm_classifier_forward.1} parent=1 // pred_check
      _
    $region27: #{lstm_classifier_forward.1} parent=1 // pred_check_branch
      %61 = sbr.rel (0) target = $region29
    $region28: #{lstm_classifier_forward.1} parent=1 // pred_region
      _
    $region29: #{lstm_classifier_forward.1} parent=1 // pred_fallthru
      _
    // Predicated region
    $region30: #{lstm_classifier_forward.1} parent=1 // pred_check
      _
    $region31: #{lstm_classifier_forward.1} parent=1 // pred_check_branch
      %63 = sbr.rel (0) target = $region33
    $region32: #{lstm_classifier_forward.1} parent=1 // pred_region
      _
    $region33: #{lstm_classifier_forward.1} parent=1 // pred_fallthru
      _
    // Predicated region
    $region34: #{lstm_classifier_forward.1} parent=1 // pred_check
      _
    $region35: #{lstm_classifier_forward.1} parent=1 // pred_check_branch
      %65 = sbr.rel (0) target = $region37
    $region36: #{lstm_classifier_forward.1} parent=1 // pred_region
      %s67 = ssub.s32 16, 16
      %68 = vsyncadd [#allocation11], %s67
      %s70 = sshll.u32 [#allocation10], 4
      %s71 = int_to_ptr.vmem [resolvable:$true] %s70
      %73 = dma.hbm_to_vmem [thread:$0]  %s8, 16, %s71, [#allocation11]
    $region37: #{lstm_classifier_forward.1} parent=1 // pred_fallthru
      _
    // Predicated region
    $region38: #{lstm_classifier_forward.1} parent=1 // pred_check
      _
    $region39: #{lstm_classifier_forward.1} parent=1 // pred_check_branch
      %75 = sbr.rel (0) target = $region41
    $region40: #{lstm_classifier_forward.1} parent=1 // pred_region
      %76 = dma.done [#allocation5], 256
    $region41: #{lstm_classifier_forward.1} parent=1 // pred_fallthru
      _
    // Predicated region
    $region42: #{lstm_classifier_forward.1} parent=1 // pred_check
      _
    $region43: #{lstm_classifier_forward.1} parent=1 // pred_check_branch
      %78 = sbr.rel (0) target = $region45
    $region44: #{lstm_classifier_forward.1} parent=1 // pred_region
      %79 = dma.done [#allocation8], 512
    $region45: #{lstm_classifier_forward.1} parent=1 // pred_fallthru
      _
    // Predicated region
    $region46: #{lstm_classifier_forward.1} parent=1 // pred_check
      _
    $region47: #{lstm_classifier_forward.1} parent=1 // pred_check_branch
      %81 = sbr.rel (0) target = $region49
    $region48: #{lstm_classifier_forward.1} parent=1 // pred_region
      %82 = dma.done [#allocation8], 512
    $region49: #{lstm_classifier_forward.1} parent=1 // pred_fallthru
      _
    // Predicated region
    $region50: #{lstm_classifier_forward.1} parent=1 // pred_check
      _
    $region51: #{lstm_classifier_forward.1} parent=1 // pred_check_branch
      %84 = sbr.rel (0) target = $region53
    $region52: #{lstm_classifier_forward.1} parent=1 // pred_region
      %85 = dma.done [#allocation11], 16
    $region53: #{lstm_classifier_forward.1} parent=1 // pred_fallthru
      _
    %v86 = vld [vmem:[%s0] sm:$0xff]
    %v87 = vld [vmem:[#allocation4] sm:$0xff]
    %v88 = vld [vmem:[#allocation4 + $0x8] sm:$0xff]
    %v89 = vld [vmem:[%s3] sm:$0x1]
    %v91 = vlaneseq
    %v92 = vshrl.u32 %v91, 7
    %v93 = vsub.s32 0, %v92
    %v94 = vrot.slane %v89, %v93
    %vm96 = vcmask 130048
    %v98 = vsel %vm96, %v86, 0
    %100 = vmatprep.subr.mxu0 0.0
    %101 = vmatpush1.msra.mxu0 0.0
    %102 = vmatprep.subr.mxu0 0.0
    %103 = vmatpush1.msra.mxu0 0.0
    %104 = vmatprep.subr.mxu0 0.0
    %105 = vmatpush1.msra.mxu0 0.0
    %106 = vmatprep.subr.mxu0 0.0
    %107 = vmatpush1.msra.mxu0 0.0
    %108 = vmatprep.subr.mxu0 0.0
    %109 = vmatpush1.msra.mxu0 0.0
    %110 = vmatprep.subr.mxu0 0.0
    %111 = vmatpush1.msra.mxu0 0.0
    %112 = vmatprep.subr.mxu0 0.0
    %113 = vmatpush1.msra.mxu0 0.0
    %114 = vmatprep.subr.mxu0 0.0
    %115 = vmatpush1.msra.mxu0 0.0
    %116 = vmatprep.subr.mxu0 0.0
    %117 = vmatpush1.msra.mxu0 0.0
    %118 = vmatprep.subr.mxu0 0.0
    %119 = vmatpush1.msra.mxu0 0.0
    %120 = vmatprep.subr.mxu0 0.0
    %121 = vmatpush1.msra.mxu0 0.0
    %122 = vmatprep.subr.mxu0 0.0
    %123 = vmatpush1.msra.mxu0 0.0
    %124 = vmatprep.subr.mxu0 0.0
    %125 = vmatpush1.msra.mxu0 0.0
    %126 = vmatprep.subr.mxu0 0.0
    %127 = vmatpush1.msra.mxu0 0.0
    %128 = vmatprep.subr.mxu0 0.0
    %129 = vmatpush1.msra.mxu0 %v88
    %130 = vmatprep.subr.mxu0 0.0
    %131 = vmatpush1.msra.mxu0 %v87
    %132 = vmatprep.subr.mxu0 0.0
    %133 = vmatpush2.msra.mxu0 0.0
    %134 = vmatprep.subr.mxu0 0.0
    %135 = vmatpush2.msra.mxu0 0.0
    %136 = vmatprep.subr.mxu0 0.0
    %137 = vmatpush2.msra.mxu0 0.0
    %138 = vmatprep.subr.mxu0 0.0
    %139 = vmatpush2.msra.mxu0 0.0
    %140 = vmatprep.subr.mxu0 0.0
    %141 = vmatpush2.msra.mxu0 0.0
    %142 = vmatprep.subr.mxu0 0.0
    %143 = vmatpush2.msra.mxu0 0.0
    %144 = vmatprep.subr.mxu0 0.0
    %145 = vmatpush2.msra.mxu0 0.0
    %146 = vmatprep.subr.mxu0 0.0
    %147 = vmatpush2.msra.mxu0 0.0
    %148 = vmatprep.subr.mxu0 0.0
    %149 = vmatpush2.msra.mxu0 0.0
    %150 = vmatprep.subr.mxu0 0.0
    %151 = vmatpush2.msra.mxu0 0.0
    %152 = vmatprep.subr.mxu0 0.0
    %153 = vmatpush2.msra.mxu0 0.0
    %154 = vmatprep.subr.mxu0 0.0
    %155 = vmatpush2.msra.mxu0 0.0
    %156 = vmatprep.subr.mxu0 0.0
    %157 = vmatpush2.msra.mxu0 0.0
    %158 = vmatprep.subr.mxu0 0.0
    %159 = vmatpush2.msra.mxu0 0.0
    %160 = vmatprep.subr.mxu0 0.0
    %161 = vmatpush2.msra.mxu0 0.0
    %162 = vmatprep.subr.mxu0 0.0
    %163 = vmatpush2.msra.mxu0 0.0
    %164 = vmatprep.mubr.f32.mxu0 0.0
    %165 = vmatmul.mubr.f32.gmra.mxu0 %v98
    %v166 = vpop.f32.mrf.mxu0
    %v167 = vadd.f32 %v94, %v166
    %v168 = vpop.f32.mrf.mxu0
    %169 = vdwg.mxu0
    %170 = vst [vmem:[#allocation2] sm:$0xff] %v167
    %v171 = vld [vmem:[%s2] sm:$0xff]
    %v172 = vld [vmem:[%s2 + $0x8] sm:$0xff]
    %v173 = vld [vmem:[%s2 + $0x10] sm:$0xff]
    %v174 = vld [vmem:[%s2 + $0x18] sm:$0xff]
    %v175 = vld [vmem:[#allocation2] sm:$0x1]
    %vm176 = vcmask 261120
    %v178 = vsel %vm176, 0.0, 0
    %180 = vmatprep.subr.mxu0 0.0
    %181 = vmatpush1.msra.mxu0 0.0
    %182 = vmatprep.subr.mxu0 0.0
    %183 = vmatpush1.msra.mxu0 0.0
    %184 = vmatprep.subr.mxu0 0.0
    %185 = vmatpush1.msra.mxu0 0.0
    %186 = vmatprep.subr.mxu0 0.0
    %187 = vmatpush1.msra.mxu0 0.0
    %188 = vmatprep.subr.mxu0 0.0
    %189 = vmatpush1.msra.mxu0 0.0
    %190 = vmatprep.subr.mxu0 0.0
    %191 = vmatpush1.msra.mxu0 0.0
    %192 = vmatprep.subr.mxu0 0.0
    %193 = vmatpush1.msra.mxu0 0.0
    %194 = vmatprep.subr.mxu0 0.0
    %195 = vmatpush1.msra.mxu0 0.0
    %196 = vmatprep.subr.mxu0 0.0
    %197 = vmatpush1.msra.mxu0 0.0
    %198 = vmatprep.subr.mxu0 0.0
    %199 = vmatpush1.msra.mxu0 0.0
    %200 = vmatprep.subr.mxu0 0.0
    %201 = vmatpush1.msra.mxu0 0.0
    %202 = vmatprep.subr.mxu0 0.0
    %203 = vmatpush1.msra.mxu0 0.0
    %204 = vmatprep.subr.mxu0 0.0
    %205 = vmatpush1.msra.mxu0 %v174
    %206 = vmatprep.subr.mxu0 0.0
    %207 = vmatpush1.msra.mxu0 %v173
    %208 = vmatprep.subr.mxu0 0.0
    %209 = vmatpush1.msra.mxu0 %v172
    %210 = vmatprep.subr.mxu0 0.0
    %211 = vmatpush1.msra.mxu0 %v171
    %212 = vmatprep.subr.mxu0 0.0
    %213 = vmatpush2.msra.mxu0 0.0
    %214 = vmatprep.subr.mxu0 0.0
    %215 = vmatpush2.msra.mxu0 0.0
    %216 = vmatprep.subr.mxu0 0.0
    %217 = vmatpush2.msra.mxu0 0.0
    %218 = vmatprep.subr.mxu0 0.0
    %219 = vmatpush2.msra.mxu0 0.0
    %220 = vmatprep.subr.mxu0 0.0
    %221 = vmatpush2.msra.mxu0 0.0
    %222 = vmatprep.subr.mxu0 0.0
    %223 = vmatpush2.msra.mxu0 0.0
    %224 = vmatprep.subr.mxu0 0.0
    %225 = vmatpush2.msra.mxu0 0.0
    %226 = vmatprep.subr.mxu0 0.0
    %227 = vmatpush2.msra.mxu0 0.0
    %228 = vmatprep.subr.mxu0 0.0
    %229 = vmatpush2.msra.mxu0 0.0
    %230 = vmatprep.subr.mxu0 0.0
    %231 = vmatpush2.msra.mxu0 0.0
    %232 = vmatprep.subr.mxu0 0.0
    %233 = vmatpush2.msra.mxu0 0.0
    %234 = vmatprep.subr.mxu0 0.0
    %235 = vmatpush2.msra.mxu0 0.0
    %236 = vmatprep.subr.mxu0 0.0
    %237 = vmatpush2.msra.mxu0 0.0
    %238 = vmatprep.subr.mxu0 0.0
    %239 = vmatpush2.msra.mxu0 0.0
    %240 = vmatprep.subr.mxu0 0.0
    %241 = vmatpush2.msra.mxu0 0.0
    %242 = vmatprep.subr.mxu0 0.0
    %243 = vmatpush2.msra.mxu0 0.0
    %244 = vmatprep.mubr.f32.mxu0 0.0
    %245 = vmatmul.mubr.f32.gmra.mxu0 %v178
    %v246 = vpop.f32.mrf.mxu0
    %v247 = vadd.f32 0.0, %v246
    %v248 = vpop.f32.mrf.mxu0
    %249 = vdwg.mxu0
    %v250 = vadd.f32 %v175, %v247
    %v251 = vxor.u32 %v250, 2147483648
    %v252 = vmul.f32 %v251, 1.442695
    %v253 = vpow.pop %v252
    %v254 = vadd.f32 %v253, 1.0
    %v255 = vrcp.pop %v254
    %v256 = vmul.f32 1.0, %v255
    %v257 = vtanh.pop %v250
    %v258 = vmul.f32 %v256, 0.0
    %260 = vrot.lane.b32.xlu0 %v257, 64
    %v261 = vpop.permute.xlu0 %260
    %v263 = vmul.f32 %v256, %v261
    %265 = vrot.lane.b32.xlu0 %v263, 32
    %v266 = vpop.permute.xlu0 %265
    %v268 = vadd.f32 %v258, %v266
    %v269 = vtanh.pop %v268
    %271 = vrot.lane.b32.xlu0 %v269, 64
    %v272 = vpop.permute.xlu0 %271
    %v274 = vmul.f32 %v256, %v272
    %276 = vrot.lane.b32.xlu0 %v274, 32
    %v277 = vpop.permute.xlu0 %276
    %vm279 = vcmask 253952
    %280 = vst.msk [vmem:[#allocation3] sm:$0x1] %vm279, %v277
    %v281 = vld [vmem:[#allocation2 + $0x1] sm:$0x1]
    %v282 = vsel %vm176, %v277, 0
    %284 = vmatprep.subr.mxu0 0.0
    %285 = vmatpush1.msra.mxu0 0.0
    %286 = vmatprep.subr.mxu0 0.0
    %287 = vmatpush1.msra.mxu0 0.0
    %288 = vmatprep.subr.mxu0 0.0
    %289 = vmatpush1.msra.mxu0 0.0
    %290 = vmatprep.subr.mxu0 0.0
    %291 = vmatpush1.msra.mxu0 0.0
    %292 = vmatprep.subr.mxu0 0.0
    %293 = vmatpush1.msra.mxu0 0.0
    %294 = vmatprep.subr.mxu0 0.0
    %295 = vmatpush1.msra.mxu0 0.0
    %296 = vmatprep.subr.mxu0 0.0
    %297 = vmatpush1.msra.mxu0 0.0
    %298 = vmatprep.subr.mxu0 0.0
    %299 = vmatpush1.msra.mxu0 0.0
    %300 = vmatprep.subr.mxu0 0.0
    %301 = vmatpush1.msra.mxu0 0.0
    %302 = vmatprep.subr.mxu0 0.0
    %303 = vmatpush1.msra.mxu0 0.0
    %304 = vmatprep.subr.mxu0 0.0
    %305 = vmatpush1.msra.mxu0 0.0
    %306 = vmatprep.subr.mxu0 0.0
    %307 = vmatpush1.msra.mxu0 0.0
    %308 = vmatprep.subr.mxu0 0.0
    %309 = vmatpush1.msra.mxu0 %v174
    %310 = vmatprep.subr.mxu0 0.0
    %311 = vmatpush1.msra.mxu0 %v173
    %312 = vmatprep.subr.mxu0 0.0
    %313 = vmatpush1.msra.mxu0 %v172
    %314 = vmatprep.subr.mxu0 0.0
    %315 = vmatpush1.msra.mxu0 %v171
    %316 = vmatprep.subr.mxu0 0.0
    %317 = vmatpush2.msra.mxu0 0.0
    %318 = vmatprep.subr.mxu0 0.0
    %319 = vmatpush2.msra.mxu0 0.0
    %320 = vmatprep.subr.mxu0 0.0
    %321 = vmatpush2.msra.mxu0 0.0
    %322 = vmatprep.subr.mxu0 0.0
    %323 = vmatpush2.msra.mxu0 0.0
    %324 = vmatprep.subr.mxu0 0.0
    %325 = vmatpush2.msra.mxu0 0.0
    %326 = vmatprep.subr.mxu0 0.0
    %327 = vmatpush2.msra.mxu0 0.0
    %328 = vmatprep.subr.mxu0 0.0
    %329 = vmatpush2.msra.mxu0 0.0
    %330 = vmatprep.subr.mxu0 0.0
    %331 = vmatpush2.msra.mxu0 0.0
    %332 = vmatprep.subr.mxu0 0.0
    %333 = vmatpush2.msra.mxu0 0.0
    %334 = vmatprep.subr.mxu0 0.0
    %335 = vmatpush2.msra.mxu0 0.0
    %336 = vmatprep.subr.mxu0 0.0
    %337 = vmatpush2.msra.mxu0 0.0
    %338 = vmatprep.subr.mxu0 0.0
    %339 = vmatpush2.msra.mxu0 0.0
    %340 = vmatprep.subr.mxu0 0.0
    %341 = vmatpush2.msra.mxu0 0.0
    %342 = vmatprep.subr.mxu0 0.0
    %343 = vmatpush2.msra.mxu0 0.0
    %344 = vmatprep.subr.mxu0 0.0
    %345 = vmatpush2.msra.mxu0 0.0
    %346 = vmatprep.subr.mxu0 0.0
    %347 = vmatpush2.msra.mxu0 0.0
    %348 = vmatprep.mubr.f32.mxu0 0.0
    %349 = vmatmul.mubr.f32.gmra.mxu0 %v282
    %v350 = vpop.f32.mrf.mxu0
    %v351 = vadd.f32 0.0, %v350
    %v352 = vpop.f32.mrf.mxu0
    %353 = vdwg.mxu0
    %v354 = vadd.f32 %v281, %v351
    %v355 = vxor.u32 %v354, 2147483648
    %v356 = vmul.f32 %v355, 1.442695
    %v357 = vpow.pop %v356
    %v358 = vadd.f32 %v357, 1.0
    %v359 = vrcp.pop %v358
    %v360 = vmul.f32 1.0, %v359
    %v361 = vtanh.pop %v354
    %v362 = vmul.f32 %v360, %v268
    %364 = vrot.lane.b32.xlu0 %v361, 64
    %v365 = vpop.permute.xlu0 %364
    %v367 = vmul.f32 %v360, %v365
    %369 = vrot.lane.b32.xlu0 %v367, 32
    %v370 = vpop.permute.xlu0 %369
    %v372 = vadd.f32 %v362, %v370
    %v373 = vtanh.pop %v372
    %375 = vrot.lane.b32.xlu0 %v373, 64
    %v376 = vpop.permute.xlu0 %375
    %v378 = vmul.f32 %v360, %v376
    %380 = vrot.lane.b32.xlu0 %v378, 32
    %v381 = vpop.permute.xlu0 %380
    %383 = vst.msk [vmem:[#allocation3 + $0x1] sm:$0x1] %vm279, %v381
    %v384 = vld [vmem:[#allocation2 + $0x2] sm:$0x1]
    %v385 = vsel %vm176, %v381, 0
    %387 = vmatprep.subr.mxu0 0.0
    %388 = vmatpush1.msra.mxu0 0.0
    %389 = vmatprep.subr.mxu0 0.0
    %390 = vmatpush1.msra.mxu0 0.0
    %391 = vmatprep.subr.mxu0 0.0
    %392 = vmatpush1.msra.mxu0 0.0
    %393 = vmatprep.subr.mxu0 0.0
    %394 = vmatpush1.msra.mxu0 0.0
    %395 = vmatprep.subr.mxu0 0.0
    %396 = vmatpush1.msra.mxu0 0.0
    %397 = vmatprep.subr.mxu0 0.0
    %398 = vmatpush1.msra.mxu0 0.0
    %399 = vmatprep.subr.mxu0 0.0
    %400 = vmatpush1.msra.mxu0 0.0
    %401 = vmatprep.subr.mxu0 0.0
    %402 = vmatpush1.msra.mxu0 0.0
    %403 = vmatprep.subr.mxu0 0.0
    %404 = vmatpush1.msra.mxu0 0.0
    %405 = vmatprep.subr.mxu0 0.0
    %406 = vmatpush1.msra.mxu0 0.0
    %407 = vmatprep.subr.mxu0 0.0
    %408 = vmatpush1.msra.mxu0 0.0
    %409 = vmatprep.subr.mxu0 0.0
    %410 = vmatpush1.msra.mxu0 0.0
    %411 = vmatprep.subr.mxu0 0.0
    %412 = vmatpush1.msra.mxu0 %v174
    %413 = vmatprep.subr.mxu0 0.0
    %414 = vmatpush1.msra.mxu0 %v173
    %415 = vmatprep.subr.mxu0 0.0
    %416 = vmatpush1.msra.mxu0 %v172
    %417 = vmatprep.subr.mxu0 0.0
    %418 = vmatpush1.msra.mxu0 %v171
    %419 = vmatprep.subr.mxu0 0.0
    %420 = vmatpush2.msra.mxu0 0.0
    %421 = vmatprep.subr.mxu0 0.0
    %422 = vmatpush2.msra.mxu0 0.0
    %423 = vmatprep.subr.mxu0 0.0
    %424 = vmatpush2.msra.mxu0 0.0
    %425 = vmatprep.subr.mxu0 0.0
    %426 = vmatpush2.msra.mxu0 0.0
    %427 = vmatprep.subr.mxu0 0.0
    %428 = vmatpush2.msra.mxu0 0.0
    %429 = vmatprep.subr.mxu0 0.0
    %430 = vmatpush2.msra.mxu0 0.0
    %431 = vmatprep.subr.mxu0 0.0
    %432 = vmatpush2.msra.mxu0 0.0
    %433 = vmatprep.subr.mxu0 0.0
    %434 = vmatpush2.msra.mxu0 0.0
    %435 = vmatprep.subr.mxu0 0.0
    %436 = vmatpush2.msra.mxu0 0.0
    %437 = vmatprep.subr.mxu0 0.0
    %438 = vmatpush2.msra.mxu0 0.0
    %439 = vmatprep.subr.mxu0 0.0
    %440 = vmatpush2.msra.mxu0 0.0
    %441 = vmatprep.subr.mxu0 0.0
    %442 = vmatpush2.msra.mxu0 0.0
    %443 = vmatprep.subr.mxu0 0.0
    %444 = vmatpush2.msra.mxu0 0.0
    %445 = vmatprep.subr.mxu0 0.0
    %446 = vmatpush2.msra.mxu0 0.0
    %447 = vmatprep.subr.mxu0 0.0
    %448 = vmatpush2.msra.mxu0 0.0
    %449 = vmatprep.subr.mxu0 0.0
    %450 = vmatpush2.msra.mxu0 0.0
    %451 = vmatprep.mubr.f32.mxu0 0.0
    %452 = vmatmul.mubr.f32.gmra.mxu0 %v385
    %v453 = vpop.f32.mrf.mxu0
    %v454 = vadd.f32 0.0, %v453
    %v455 = vpop.f32.mrf.mxu0
    %456 = vdwg.mxu0
    %v457 = vadd.f32 %v384, %v454
    %v458 = vxor.u32 %v457, 2147483648
    %v459 = vmul.f32 %v458, 1.442695
    %v460 = vpow.pop %v459
    %v461 = vadd.f32 %v460, 1.0
    %v462 = vrcp.pop %v461
    %v463 = vmul.f32 1.0, %v462
    %v464 = vtanh.pop %v457
    %v465 = vmul.f32 %v463, %v372
    %467 = vrot.lane.b32.xlu0 %v464, 64
    %v468 = vpop.permute.xlu0 %467
    %v470 = vmul.f32 %v463, %v468
    %472 = vrot.lane.b32.xlu0 %v470, 32
    %v473 = vpop.permute.xlu0 %472
    %v475 = vadd.f32 %v465, %v473
    %v476 = vtanh.pop %v475
    %478 = vrot.lane.b32.xlu0 %v476, 64
    %v479 = vpop.permute.xlu0 %478
    %v481 = vmul.f32 %v463, %v479
    %483 = vrot.lane.b32.xlu0 %v481, 32
    %v484 = vpop.permute.xlu0 %483
    %486 = vst.msk [vmem:[#allocation3 + $0x2] sm:$0x1] %vm279, %v484
    %v487 = vld [vmem:[#allocation2 + $0x3] sm:$0x1]
    %v488 = vsel %vm176, %v484, 0
    %490 = vmatprep.subr.mxu0 0.0
    %491 = vmatpush1.msra.mxu0 0.0
    %492 = vmatprep.subr.mxu0 0.0
    %493 = vmatpush1.msra.mxu0 0.0
    %494 = vmatprep.subr.mxu0 0.0
    %495 = vmatpush1.msra.mxu0 0.0
    %496 = vmatprep.subr.mxu0 0.0
    %497 = vmatpush1.msra.mxu0 0.0
    %498 = vmatprep.subr.mxu0 0.0
    %499 = vmatpush1.msra.mxu0 0.0
    %500 = vmatprep.subr.mxu0 0.0
    %501 = vmatpush1.msra.mxu0 0.0
    %502 = vmatprep.subr.mxu0 0.0
    %503 = vmatpush1.msra.mxu0 0.0
    %504 = vmatprep.subr.mxu0 0.0
    %505 = vmatpush1.msra.mxu0 0.0
    %506 = vmatprep.subr.mxu0 0.0
    %507 = vmatpush1.msra.mxu0 0.0
    %508 = vmatprep.subr.mxu0 0.0
    %509 = vmatpush1.msra.mxu0 0.0
    %510 = vmatprep.subr.mxu0 0.0
    %511 = vmatpush1.msra.mxu0 0.0
    %512 = vmatprep.subr.mxu0 0.0
    %513 = vmatpush1.msra.mxu0 0.0
    %514 = vmatprep.subr.mxu0 0.0
    %515 = vmatpush1.msra.mxu0 %v174
    %516 = vmatprep.subr.mxu0 0.0
    %517 = vmatpush1.msra.mxu0 %v173
    %518 = vmatprep.subr.mxu0 0.0
    %519 = vmatpush1.msra.mxu0 %v172
    %520 = vmatprep.subr.mxu0 0.0
    %521 = vmatpush1.msra.mxu0 %v171
    %522 = vmatprep.subr.mxu0 0.0
    %523 = vmatpush2.msra.mxu0 0.0
    %524 = vmatprep.subr.mxu0 0.0
    %525 = vmatpush2.msra.mxu0 0.0
    %526 = vmatprep.subr.mxu0 0.0
    %527 = vmatpush2.msra.mxu0 0.0
    %528 = vmatprep.subr.mxu0 0.0
    %529 = vmatpush2.msra.mxu0 0.0
    %530 = vmatprep.subr.mxu0 0.0
    %531 = vmatpush2.msra.mxu0 0.0
    %532 = vmatprep.subr.mxu0 0.0
    %533 = vmatpush2.msra.mxu0 0.0
    %534 = vmatprep.subr.mxu0 0.0
    %535 = vmatpush2.msra.mxu0 0.0
    %536 = vmatprep.subr.mxu0 0.0
    %537 = vmatpush2.msra.mxu0 0.0
    %538 = vmatprep.subr.mxu0 0.0
    %539 = vmatpush2.msra.mxu0 0.0
    %540 = vmatprep.subr.mxu0 0.0
    %541 = vmatpush2.msra.mxu0 0.0
    %542 = vmatprep.subr.mxu0 0.0
    %543 = vmatpush2.msra.mxu0 0.0
    %544 = vmatprep.subr.mxu0 0.0
    %545 = vmatpush2.msra.mxu0 0.0
    %546 = vmatprep.subr.mxu0 0.0
    %547 = vmatpush2.msra.mxu0 0.0
    %548 = vmatprep.subr.mxu0 0.0
    %549 = vmatpush2.msra.mxu0 0.0
    %550 = vmatprep.subr.mxu0 0.0
    %551 = vmatpush2.msra.mxu0 0.0
    %552 = vmatprep.subr.mxu0 0.0
    %553 = vmatpush2.msra.mxu0 0.0
    %554 = vmatprep.mubr.f32.mxu0 0.0
    %555 = vmatmul.mubr.f32.gmra.mxu0 %v488
    %v556 = vpop.f32.mrf.mxu0
    %v557 = vadd.f32 0.0, %v556
    %v558 = vpop.f32.mrf.mxu0
    %559 = vdwg.mxu0
    %v560 = vadd.f32 %v487, %v557
    %v561 = vxor.u32 %v560, 2147483648
    %v562 = vmul.f32 %v561, 1.442695
    %v563 = vpow.pop %v562
    %v564 = vadd.f32 %v563, 1.0
    %v565 = vrcp.pop %v564
    %v566 = vmul.f32 1.0, %v565
    %v567 = vtanh.pop %v560
    %v568 = vmul.f32 %v566, %v475
    %570 = vrot.lane.b32.xlu0 %v567, 64
    %v571 = vpop.permute.xlu0 %570
    %v573 = vmul.f32 %v566, %v571
    %575 = vrot.lane.b32.xlu0 %v573, 32
    %v576 = vpop.permute.xlu0 %575
    %v578 = vadd.f32 %v568, %v576
    %v579 = vtanh.pop %v578
    %581 = vrot.lane.b32.xlu0 %v579, 64
    %v582 = vpop.permute.xlu0 %581
    %v584 = vmul.f32 %v566, %v582
    %586 = vrot.lane.b32.xlu0 %v584, 32
    %v587 = vpop.permute.xlu0 %586
    %589 = vst.msk [vmem:[#allocation3 + $0x3] sm:$0x1] %vm279, %v587
    %v590 = vld [vmem:[#allocation2 + $0x4] sm:$0x1]
    %v591 = vsel %vm176, %v587, 0
    %593 = vmatprep.subr.mxu0 0.0
    %594 = vmatpush1.msra.mxu0 0.0
    %595 = vmatprep.subr.mxu0 0.0
    %596 = vmatpush1.msra.mxu0 0.0
    %597 = vmatprep.subr.mxu0 0.0
    %598 = vmatpush1.msra.mxu0 0.0
    %599 = vmatprep.subr.mxu0 0.0
    %600 = vmatpush1.msra.mxu0 0.0
    %601 = vmatprep.subr.mxu0 0.0
    %602 = vmatpush1.msra.mxu0 0.0
    %603 = vmatprep.subr.mxu0 0.0
    %604 = vmatpush1.msra.mxu0 0.0
    %605 = vmatprep.subr.mxu0 0.0
    %606 = vmatpush1.msra.mxu0 0.0
    %607 = vmatprep.subr.mxu0 0.0
    %608 = vmatpush1.msra.mxu0 0.0
    %609 = vmatprep.subr.mxu0 0.0
    %610 = vmatpush1.msra.mxu0 0.0
    %611 = vmatprep.subr.mxu0 0.0
    %612 = vmatpush1.msra.mxu0 0.0
    %613 = vmatprep.subr.mxu0 0.0
    %614 = vmatpush1.msra.mxu0 0.0
    %615 = vmatprep.subr.mxu0 0.0
    %616 = vmatpush1.msra.mxu0 0.0
    %617 = vmatprep.subr.mxu0 0.0
    %618 = vmatpush1.msra.mxu0 %v174
    %619 = vmatprep.subr.mxu0 0.0
    %620 = vmatpush1.msra.mxu0 %v173
    %621 = vmatprep.subr.mxu0 0.0
    %622 = vmatpush1.msra.mxu0 %v172
    %623 = vmatprep.subr.mxu0 0.0
    %624 = vmatpush1.msra.mxu0 %v171
    %625 = vmatprep.subr.mxu0 0.0
    %626 = vmatpush2.msra.mxu0 0.0
    %627 = vmatprep.subr.mxu0 0.0
    %628 = vmatpush2.msra.mxu0 0.0
    %629 = vmatprep.subr.mxu0 0.0
    %630 = vmatpush2.msra.mxu0 0.0
    %631 = vmatprep.subr.mxu0 0.0
    %632 = vmatpush2.msra.mxu0 0.0
    %633 = vmatprep.subr.mxu0 0.0
    %634 = vmatpush2.msra.mxu0 0.0
    %635 = vmatprep.subr.mxu0 0.0
    %636 = vmatpush2.msra.mxu0 0.0
    %637 = vmatprep.subr.mxu0 0.0
    %638 = vmatpush2.msra.mxu0 0.0
    %639 = vmatprep.subr.mxu0 0.0
    %640 = vmatpush2.msra.mxu0 0.0
    %641 = vmatprep.subr.mxu0 0.0
    %642 = vmatpush2.msra.mxu0 0.0
    %643 = vmatprep.subr.mxu0 0.0
    %644 = vmatpush2.msra.mxu0 0.0
    %645 = vmatprep.subr.mxu0 0.0
    %646 = vmatpush2.msra.mxu0 0.0
    %647 = vmatprep.subr.mxu0 0.0
    %648 = vmatpush2.msra.mxu0 0.0
    %649 = vmatprep.subr.mxu0 0.0
    %650 = vmatpush2.msra.mxu0 0.0
    %651 = vmatprep.subr.mxu0 0.0
    %652 = vmatpush2.msra.mxu0 0.0
    %653 = vmatprep.subr.mxu0 0.0
    %654 = vmatpush2.msra.mxu0 0.0
    %655 = vmatprep.subr.mxu0 0.0
    %656 = vmatpush2.msra.mxu0 0.0
    %657 = vmatprep.mubr.f32.mxu0 0.0
    %658 = vmatmul.mubr.f32.gmra.mxu0 %v591
    %v659 = vpop.f32.mrf.mxu0
    %v660 = vadd.f32 0.0, %v659
    %v661 = vpop.f32.mrf.mxu0
    %662 = vdwg.mxu0
    %v663 = vadd.f32 %v590, %v660
    %v664 = vxor.u32 %v663, 2147483648
    %v665 = vmul.f32 %v664, 1.442695
    %v666 = vpow.pop %v665
    %v667 = vadd.f32 %v666, 1.0
    %v668 = vrcp.pop %v667
    %v669 = vmul.f32 1.0, %v668
    %v670 = vtanh.pop %v663
    %v671 = vmul.f32 %v669, %v578
    %673 = vrot.lane.b32.xlu0 %v670, 64
    %v674 = vpop.permute.xlu0 %673
    %v676 = vmul.f32 %v669, %v674
    %678 = vrot.lane.b32.xlu0 %v676, 32
    %v679 = vpop.permute.xlu0 %678
    %v681 = vadd.f32 %v671, %v679
    %v682 = vtanh.pop %v681
    %684 = vrot.lane.b32.xlu0 %v682, 64
    %v685 = vpop.permute.xlu0 %684
    %v687 = vmul.f32 %v669, %v685
    %689 = vrot.lane.b32.xlu0 %v687, 32
    %v690 = vpop.permute.xlu0 %689
    %692 = vst.msk [vmem:[#allocation3 + $0x4] sm:$0x1] %vm279, %v690
    %v693 = vld [vmem:[#allocation2 + $0x5] sm:$0x1]
    %v694 = vsel %vm176, %v690, 0
    %696 = vmatprep.subr.mxu0 0.0
    %697 = vmatpush1.msra.mxu0 0.0
    %698 = vmatprep.subr.mxu0 0.0
    %699 = vmatpush1.msra.mxu0 0.0
    %700 = vmatprep.subr.mxu0 0.0
    %701 = vmatpush1.msra.mxu0 0.0
    %702 = vmatprep.subr.mxu0 0.0
    %703 = vmatpush1.msra.mxu0 0.0
    %704 = vmatprep.subr.mxu0 0.0
    %705 = vmatpush1.msra.mxu0 0.0
    %706 = vmatprep.subr.mxu0 0.0
    %707 = vmatpush1.msra.mxu0 0.0
    %708 = vmatprep.subr.mxu0 0.0
    %709 = vmatpush1.msra.mxu0 0.0
    %710 = vmatprep.subr.mxu0 0.0
    %711 = vmatpush1.msra.mxu0 0.0
    %712 = vmatprep.subr.mxu0 0.0
    %713 = vmatpush1.msra.mxu0 0.0
    %714 = vmatprep.subr.mxu0 0.0
    %715 = vmatpush1.msra.mxu0 0.0
    %716 = vmatprep.subr.mxu0 0.0
    %717 = vmatpush1.msra.mxu0 0.0
    %718 = vmatprep.subr.mxu0 0.0
    %719 = vmatpush1.msra.mxu0 0.0
    %720 = vmatprep.subr.mxu0 0.0
    %721 = vmatpush1.msra.mxu0 %v174
    %722 = vmatprep.subr.mxu0 0.0
    %723 = vmatpush1.msra.mxu0 %v173
    %724 = vmatprep.subr.mxu0 0.0
    %725 = vmatpush1.msra.mxu0 %v172
    %726 = vmatprep.subr.mxu0 0.0
    %727 = vmatpush1.msra.mxu0 %v171
    %728 = vmatprep.subr.mxu0 0.0
    %729 = vmatpush2.msra.mxu0 0.0
    %730 = vmatprep.subr.mxu0 0.0
    %731 = vmatpush2.msra.mxu0 0.0
    %732 = vmatprep.subr.mxu0 0.0
    %733 = vmatpush2.msra.mxu0 0.0
    %734 = vmatprep.subr.mxu0 0.0
    %735 = vmatpush2.msra.mxu0 0.0
    %736 = vmatprep.subr.mxu0 0.0
    %737 = vmatpush2.msra.mxu0 0.0
    %738 = vmatprep.subr.mxu0 0.0
    %739 = vmatpush2.msra.mxu0 0.0
    %740 = vmatprep.subr.mxu0 0.0
    %741 = vmatpush2.msra.mxu0 0.0
    %742 = vmatprep.subr.mxu0 0.0
    %743 = vmatpush2.msra.mxu0 0.0
    %744 = vmatprep.subr.mxu0 0.0
    %745 = vmatpush2.msra.mxu0 0.0
    %746 = vmatprep.subr.mxu0 0.0
    %747 = vmatpush2.msra.mxu0 0.0
    %748 = vmatprep.subr.mxu0 0.0
    %749 = vmatpush2.msra.mxu0 0.0
    %750 = vmatprep.subr.mxu0 0.0
    %751 = vmatpush2.msra.mxu0 0.0
    %752 = vmatprep.subr.mxu0 0.0
    %753 = vmatpush2.msra.mxu0 0.0
    %754 = vmatprep.subr.mxu0 0.0
    %755 = vmatpush2.msra.mxu0 0.0
    %756 = vmatprep.subr.mxu0 0.0
    %757 = vmatpush2.msra.mxu0 0.0
    %758 = vmatprep.subr.mxu0 0.0
    %759 = vmatpush2.msra.mxu0 0.0
    %760 = vmatprep.mubr.f32.mxu0 0.0
    %761 = vmatmul.mubr.f32.gmra.mxu0 %v694
    %v762 = vpop.f32.mrf.mxu0
    %v763 = vadd.f32 0.0, %v762
    %v764 = vpop.f32.mrf.mxu0
    %765 = vdwg.mxu0
    %v766 = vadd.f32 %v693, %v763
    %v767 = vxor.u32 %v766, 2147483648
    %v768 = vmul.f32 %v767, 1.442695
    %v769 = vpow.pop %v768
    %v770 = vadd.f32 %v769, 1.0
    %v771 = vrcp.pop %v770
    %v772 = vmul.f32 1.0, %v771
    %v773 = vtanh.pop %v766
    %v774 = vmul.f32 %v772, %v681
    %776 = vrot.lane.b32.xlu0 %v773, 64
    %v777 = vpop.permute.xlu0 %776
    %v779 = vmul.f32 %v772, %v777
    %781 = vrot.lane.b32.xlu0 %v779, 32
    %v782 = vpop.permute.xlu0 %781
    %v784 = vadd.f32 %v774, %v782
    %v785 = vtanh.pop %v784
    %787 = vrot.lane.b32.xlu0 %v785, 64
    %v788 = vpop.permute.xlu0 %787
    %v790 = vmul.f32 %v772, %v788
    %792 = vrot.lane.b32.xlu0 %v790, 32
    %v793 = vpop.permute.xlu0 %792
    %795 = vst.msk [vmem:[#allocation3 + $0x5] sm:$0x1] %vm279, %v793
    %v796 = vld [vmem:[#allocation2 + $0x6] sm:$0x1]
    %v797 = vsel %vm176, %v793, 0
    %799 = vmatprep.subr.mxu0 0.0
    %800 = vmatpush1.msra.mxu0 0.0
    %801 = vmatprep.subr.mxu0 0.0
    %802 = vmatpush1.msra.mxu0 0.0
    %803 = vmatprep.subr.mxu0 0.0
    %804 = vmatpush1.msra.mxu0 0.0
    %805 = vmatprep.subr.mxu0 0.0
    %806 = vmatpush1.msra.mxu0 0.0
    %807 = vmatprep.subr.mxu0 0.0
    %808 = vmatpush1.msra.mxu0 0.0
    %809 = vmatprep.subr.mxu0 0.0
    %810 = vmatpush1.msra.mxu0 0.0
    %811 = vmatprep.subr.mxu0 0.0
    %812 = vmatpush1.msra.mxu0 0.0
    %813 = vmatprep.subr.mxu0 0.0
    %814 = vmatpush1.msra.mxu0 0.0
    %815 = vmatprep.subr.mxu0 0.0
    %816 = vmatpush1.msra.mxu0 0.0
    %817 = vmatprep.subr.mxu0 0.0
    %818 = vmatpush1.msra.mxu0 0.0
    %819 = vmatprep.subr.mxu0 0.0
    %820 = vmatpush1.msra.mxu0 0.0
    %821 = vmatprep.subr.mxu0 0.0
    %822 = vmatpush1.msra.mxu0 0.0
    %823 = vmatprep.subr.mxu0 0.0
    %824 = vmatpush1.msra.mxu0 %v174
    %825 = vmatprep.subr.mxu0 0.0
    %826 = vmatpush1.msra.mxu0 %v173
    %827 = vmatprep.subr.mxu0 0.0
    %828 = vmatpush1.msra.mxu0 %v172
    %829 = vmatprep.subr.mxu0 0.0
    %830 = vmatpush1.msra.mxu0 %v171
    %831 = vmatprep.subr.mxu0 0.0
    %832 = vmatpush2.msra.mxu0 0.0
    %833 = vmatprep.subr.mxu0 0.0
    %834 = vmatpush2.msra.mxu0 0.0
    %835 = vmatprep.subr.mxu0 0.0
    %836 = vmatpush2.msra.mxu0 0.0
    %837 = vmatprep.subr.mxu0 0.0
    %838 = vmatpush2.msra.mxu0 0.0
    %839 = vmatprep.subr.mxu0 0.0
    %840 = vmatpush2.msra.mxu0 0.0
    %841 = vmatprep.subr.mxu0 0.0
    %842 = vmatpush2.msra.mxu0 0.0
    %843 = vmatprep.subr.mxu0 0.0
    %844 = vmatpush2.msra.mxu0 0.0
    %845 = vmatprep.subr.mxu0 0.0
    %846 = vmatpush2.msra.mxu0 0.0
    %847 = vmatprep.subr.mxu0 0.0
    %848 = vmatpush2.msra.mxu0 0.0
    %849 = vmatprep.subr.mxu0 0.0
    %850 = vmatpush2.msra.mxu0 0.0
    %851 = vmatprep.subr.mxu0 0.0
    %852 = vmatpush2.msra.mxu0 0.0
    %853 = vmatprep.subr.mxu0 0.0
    %854 = vmatpush2.msra.mxu0 0.0
    %855 = vmatprep.subr.mxu0 0.0
    %856 = vmatpush2.msra.mxu0 0.0
    %857 = vmatprep.subr.mxu0 0.0
    %858 = vmatpush2.msra.mxu0 0.0
    %859 = vmatprep.subr.mxu0 0.0
    %860 = vmatpush2.msra.mxu0 0.0
    %861 = vmatprep.subr.mxu0 0.0
    %862 = vmatpush2.msra.mxu0 0.0
    %863 = vmatprep.mubr.f32.mxu0 0.0
    %864 = vmatmul.mubr.f32.gmra.mxu0 %v797
    %v865 = vpop.f32.mrf.mxu0
    %v866 = vadd.f32 0.0, %v865
    %v867 = vpop.f32.mrf.mxu0
    %868 = vdwg.mxu0
    %v869 = vadd.f32 %v796, %v866
    %v870 = vxor.u32 %v869, 2147483648
    %v871 = vmul.f32 %v870, 1.442695
    %v872 = vpow.pop %v871
    %v873 = vadd.f32 %v872, 1.0
    %v874 = vrcp.pop %v873
    %v875 = vmul.f32 1.0, %v874
    %v876 = vtanh.pop %v869
    %v877 = vmul.f32 %v875, %v784
    %879 = vrot.lane.b32.xlu0 %v876, 64
    %v880 = vpop.permute.xlu0 %879
    %v882 = vmul.f32 %v875, %v880
    %884 = vrot.lane.b32.xlu0 %v882, 32
    %v885 = vpop.permute.xlu0 %884
    %v887 = vadd.f32 %v877, %v885
    %v888 = vtanh.pop %v887
    %890 = vrot.lane.b32.xlu0 %v888, 64
    %v891 = vpop.permute.xlu0 %890
    %v893 = vmul.f32 %v875, %v891
    %895 = vrot.lane.b32.xlu0 %v893, 32
    %v896 = vpop.permute.xlu0 %895
    %898 = vst.msk [vmem:[#allocation3 + $0x6] sm:$0x1] %vm279, %v896
    %v899 = vld [vmem:[#allocation2 + $0x7] sm:$0x1]
    %v900 = vsel %vm176, %v896, 0
    %902 = vmatprep.subr.mxu0 0.0
    %903 = vmatpush1.msra.mxu0 0.0
    %904 = vmatprep.subr.mxu0 0.0
    %905 = vmatpush1.msra.mxu0 0.0
    %906 = vmatprep.subr.mxu0 0.0
    %907 = vmatpush1.msra.mxu0 0.0
    %908 = vmatprep.subr.mxu0 0.0
    %909 = vmatpush1.msra.mxu0 0.0
    %910 = vmatprep.subr.mxu0 0.0
    %911 = vmatpush1.msra.mxu0 0.0
    %912 = vmatprep.subr.mxu0 0.0
    %913 = vmatpush1.msra.mxu0 0.0
    %914 = vmatprep.subr.mxu0 0.0
    %915 = vmatpush1.msra.mxu0 0.0
    %916 = vmatprep.subr.mxu0 0.0
    %917 = vmatpush1.msra.mxu0 0.0
    %918 = vmatprep.subr.mxu0 0.0
    %919 = vmatpush1.msra.mxu0 0.0
    %920 = vmatprep.subr.mxu0 0.0
    %921 = vmatpush1.msra.mxu0 0.0
    %922 = vmatprep.subr.mxu0 0.0
    %923 = vmatpush1.msra.mxu0 0.0
    %924 = vmatprep.subr.mxu0 0.0
    %925 = vmatpush1.msra.mxu0 0.0
    %926 = vmatprep.subr.mxu0 0.0
    %927 = vmatpush1.msra.mxu0 %v174
    %928 = vmatprep.subr.mxu0 0.0
    %929 = vmatpush1.msra.mxu0 %v173
    %930 = vmatprep.subr.mxu0 0.0
    %931 = vmatpush1.msra.mxu0 %v172
    %932 = vmatprep.subr.mxu0 0.0
    %933 = vmatpush1.msra.mxu0 %v171
    %934 = vmatprep.subr.mxu0 0.0
    %935 = vmatpush2.msra.mxu0 0.0
    %936 = vmatprep.subr.mxu0 0.0
    %937 = vmatpush2.msra.mxu0 0.0
    %938 = vmatprep.subr.mxu0 0.0
    %939 = vmatpush2.msra.mxu0 0.0
    %940 = vmatprep.subr.mxu0 0.0
    %941 = vmatpush2.msra.mxu0 0.0
    %942 = vmatprep.subr.mxu0 0.0
    %943 = vmatpush2.msra.mxu0 0.0
    %944 = vmatprep.subr.mxu0 0.0
    %945 = vmatpush2.msra.mxu0 0.0
    %946 = vmatprep.subr.mxu0 0.0
    %947 = vmatpush2.msra.mxu0 0.0
    %948 = vmatprep.subr.mxu0 0.0
    %949 = vmatpush2.msra.mxu0 0.0
    %950 = vmatprep.subr.mxu0 0.0
    %951 = vmatpush2.msra.mxu0 0.0
    %952 = vmatprep.subr.mxu0 0.0
    %953 = vmatpush2.msra.mxu0 0.0
    %954 = vmatprep.subr.mxu0 0.0
    %955 = vmatpush2.msra.mxu0 0.0
    %956 = vmatprep.subr.mxu0 0.0
    %957 = vmatpush2.msra.mxu0 0.0
    %958 = vmatprep.subr.mxu0 0.0
    %959 = vmatpush2.msra.mxu0 0.0
    %960 = vmatprep.subr.mxu0 0.0
    %961 = vmatpush2.msra.mxu0 0.0
    %962 = vmatprep.subr.mxu0 0.0
    %963 = vmatpush2.msra.mxu0 0.0
    %964 = vmatprep.subr.mxu0 0.0
    %965 = vmatpush2.msra.mxu0 0.0
    %966 = vmatprep.mubr.f32.mxu0 0.0
    %967 = vmatmul.mubr.f32.gmra.mxu0 %v900
    %v968 = vpop.f32.mrf.mxu0
    %v969 = vadd.f32 0.0, %v968
    %v970 = vpop.f32.mrf.mxu0
    %971 = vdwg.mxu0
    %v972 = vadd.f32 %v899, %v969
    %v973 = vxor.u32 %v972, 2147483648
    %v974 = vmul.f32 %v973, 1.442695
    %v975 = vpow.pop %v974
    %v976 = vadd.f32 %v975, 1.0
    %v977 = vrcp.pop %v976
    %v978 = vmul.f32 1.0, %v977
    %v979 = vtanh.pop %v972
    %v980 = vmul.f32 %v978, %v887
    %982 = vrot.lane.b32.xlu0 %v979, 64
    %v983 = vpop.permute.xlu0 %982
    %v985 = vmul.f32 %v978, %v983
    %987 = vrot.lane.b32.xlu0 %v985, 32
    %v988 = vpop.permute.xlu0 %987
    %v990 = vadd.f32 %v980, %v988
    %v991 = vtanh.pop %v990
    %993 = vrot.lane.b32.xlu0 %v991, 64
    %v994 = vpop.permute.xlu0 %993
    %v996 = vmul.f32 %v978, %v994
    %998 = vrot.lane.b32.xlu0 %v996, 32
    %v999 = vpop.permute.xlu0 %998
    %1001 = vst.msk [vmem:[#allocation3 + $0x7] sm:$0x1] %vm279, %v999
    %v1002 = vld [vmem:[#allocation3] sm:$0xff]
    %v1003 = vld [vmem:[#allocation7] sm:$0xff]
    %v1004 = vld [vmem:[#allocation7 + $0x8] sm:$0xff]
    %v1005 = vld [vmem:[#allocation7 + $0x10] sm:$0xff]
    %v1006 = vld [vmem:[#allocation7 + $0x18] sm:$0xff]
    %v1007 = vld [vmem:[%s6] sm:$0x1]
    %v1009 = vlaneseq
    %v1010 = vshrl.u32 %v1009, 7
    %v1011 = vsub.s32 0, %v1010
    %v1012 = vrot.slane %v1007, %v1011
    %v1015 = vsel %vm176, %v1002, 0
    %1017 = vmatprep.subr.mxu0 0.0
    %1018 = vmatpush1.msra.mxu0 0.0
    %1019 = vmatprep.subr.mxu0 0.0
    %1020 = vmatpush1.msra.mxu0 0.0
    %1021 = vmatprep.subr.mxu0 0.0
    %1022 = vmatpush1.msra.mxu0 0.0
    %1023 = vmatprep.subr.mxu0 0.0
    %1024 = vmatpush1.msra.mxu0 0.0
    %1025 = vmatprep.subr.mxu0 0.0
    %1026 = vmatpush1.msra.mxu0 0.0
    %1027 = vmatprep.subr.mxu0 0.0
    %1028 = vmatpush1.msra.mxu0 0.0
    %1029 = vmatprep.subr.mxu0 0.0
    %1030 = vmatpush1.msra.mxu0 0.0
    %1031 = vmatprep.subr.mxu0 0.0
    %1032 = vmatpush1.msra.mxu0 0.0
    %1033 = vmatprep.subr.mxu0 0.0
    %1034 = vmatpush1.msra.mxu0 0.0
    %1035 = vmatprep.subr.mxu0 0.0
    %1036 = vmatpush1.msra.mxu0 0.0
    %1037 = vmatprep.subr.mxu0 0.0
    %1038 = vmatpush1.msra.mxu0 0.0
    %1039 = vmatprep.subr.mxu0 0.0
    %1040 = vmatpush1.msra.mxu0 0.0
    %1041 = vmatprep.subr.mxu0 0.0
    %1042 = vmatpush1.msra.mxu0 %v1006
    %1043 = vmatprep.subr.mxu0 0.0
    %1044 = vmatpush1.msra.mxu0 %v1005
    %1045 = vmatprep.subr.mxu0 0.0
    %1046 = vmatpush1.msra.mxu0 %v1004
    %1047 = vmatprep.subr.mxu0 0.0
    %1048 = vmatpush1.msra.mxu0 %v1003
    %1049 = vmatprep.subr.mxu0 0.0
    %1050 = vmatpush2.msra.mxu0 0.0
    %1051 = vmatprep.subr.mxu0 0.0
    %1052 = vmatpush2.msra.mxu0 0.0
    %1053 = vmatprep.subr.mxu0 0.0
    %1054 = vmatpush2.msra.mxu0 0.0
    %1055 = vmatprep.subr.mxu0 0.0
    %1056 = vmatpush2.msra.mxu0 0.0
    %1057 = vmatprep.subr.mxu0 0.0
    %1058 = vmatpush2.msra.mxu0 0.0
    %1059 = vmatprep.subr.mxu0 0.0
    %1060 = vmatpush2.msra.mxu0 0.0
    %1061 = vmatprep.subr.mxu0 0.0
    %1062 = vmatpush2.msra.mxu0 0.0
    %1063 = vmatprep.subr.mxu0 0.0
    %1064 = vmatpush2.msra.mxu0 0.0
    %1065 = vmatprep.subr.mxu0 0.0
    %1066 = vmatpush2.msra.mxu0 0.0
    %1067 = vmatprep.subr.mxu0 0.0
    %1068 = vmatpush2.msra.mxu0 0.0
    %1069 = vmatprep.subr.mxu0 0.0
    %1070 = vmatpush2.msra.mxu0 0.0
    %1071 = vmatprep.subr.mxu0 0.0
    %1072 = vmatpush2.msra.mxu0 0.0
    %1073 = vmatprep.subr.mxu0 0.0
    %1074 = vmatpush2.msra.mxu0 0.0
    %1075 = vmatprep.subr.mxu0 0.0
    %1076 = vmatpush2.msra.mxu0 0.0
    %1077 = vmatprep.subr.mxu0 0.0
    %1078 = vmatpush2.msra.mxu0 0.0
    %1079 = vmatprep.subr.mxu0 0.0
    %1080 = vmatpush2.msra.mxu0 0.0
    %1081 = vmatprep.mubr.f32.mxu0 0.0
    %1082 = vmatmul.mubr.f32.gmra.mxu0 %v1015
    %v1083 = vpop.f32.mrf.mxu0
    %v1084 = vadd.f32 %v1012, %v1083
    %v1085 = vpop.f32.mrf.mxu0
    %1086 = vdwg.mxu0
    %1087 = vst [vmem:[#allocation2] sm:$0xff] %v1084
    %v1088 = vld [vmem:[#allocation9] sm:$0xff]
    %v1089 = vld [vmem:[#allocation9 + $0x8] sm:$0xff]
    %v1090 = vld [vmem:[#allocation9 + $0x10] sm:$0xff]
    %v1091 = vld [vmem:[#allocation9 + $0x18] sm:$0xff]
    %v1092 = vld [vmem:[#allocation2] sm:$0x1]
    %1093 = vmatprep.subr.mxu0 0.0
    %1094 = vmatpush1.msra.mxu0 0.0
    %1095 = vmatprep.subr.mxu0 0.0
    %1096 = vmatpush1.msra.mxu0 0.0
    %1097 = vmatprep.subr.mxu0 0.0
    %1098 = vmatpush1.msra.mxu0 0.0
    %1099 = vmatprep.subr.mxu0 0.0
    %1100 = vmatpush1.msra.mxu0 0.0
    %1101 = vmatprep.subr.mxu0 0.0
    %1102 = vmatpush1.msra.mxu0 0.0
    %1103 = vmatprep.subr.mxu0 0.0
    %1104 = vmatpush1.msra.mxu0 0.0
    %1105 = vmatprep.subr.mxu0 0.0
    %1106 = vmatpush1.msra.mxu0 0.0
    %1107 = vmatprep.subr.mxu0 0.0
    %1108 = vmatpush1.msra.mxu0 0.0
    %1109 = vmatprep.subr.mxu0 0.0
    %1110 = vmatpush1.msra.mxu0 0.0
    %1111 = vmatprep.subr.mxu0 0.0
    %1112 = vmatpush1.msra.mxu0 0.0
    %1113 = vmatprep.subr.mxu0 0.0
    %1114 = vmatpush1.msra.mxu0 0.0
    %1115 = vmatprep.subr.mxu0 0.0
    %1116 = vmatpush1.msra.mxu0 0.0
    %1117 = vmatprep.subr.mxu0 0.0
    %1118 = vmatpush1.msra.mxu0 %v1091
    %1119 = vmatprep.subr.mxu0 0.0
    %1120 = vmatpush1.msra.mxu0 %v1090
    %1121 = vmatprep.subr.mxu0 0.0
    %1122 = vmatpush1.msra.mxu0 %v1089
    %1123 = vmatprep.subr.mxu0 0.0
    %1124 = vmatpush1.msra.mxu0 %v1088
    %1125 = vmatprep.subr.mxu0 0.0
    %1126 = vmatpush2.msra.mxu0 0.0
    %1127 = vmatprep.subr.mxu0 0.0
    %1128 = vmatpush2.msra.mxu0 0.0
    %1129 = vmatprep.subr.mxu0 0.0
    %1130 = vmatpush2.msra.mxu0 0.0
    %1131 = vmatprep.subr.mxu0 0.0
    %1132 = vmatpush2.msra.mxu0 0.0
    %1133 = vmatprep.subr.mxu0 0.0
    %1134 = vmatpush2.msra.mxu0 0.0
    %1135 = vmatprep.subr.mxu0 0.0
    %1136 = vmatpush2.msra.mxu0 0.0
    %1137 = vmatprep.subr.mxu0 0.0
    %1138 = vmatpush2.msra.mxu0 0.0
    %1139 = vmatprep.subr.mxu0 0.0
    %1140 = vmatpush2.msra.mxu0 0.0
    %1141 = vmatprep.subr.mxu0 0.0
    %1142 = vmatpush2.msra.mxu0 0.0
    %1143 = vmatprep.subr.mxu0 0.0
    %1144 = vmatpush2.msra.mxu0 0.0
    %1145 = vmatprep.subr.mxu0 0.0
    %1146 = vmatpush2.msra.mxu0 0.0
    %1147 = vmatprep.subr.mxu0 0.0
    %1148 = vmatpush2.msra.mxu0 0.0
    %1149 = vmatprep.subr.mxu0 0.0
    %1150 = vmatpush2.msra.mxu0 0.0
    %1151 = vmatprep.subr.mxu0 0.0
    %1152 = vmatpush2.msra.mxu0 0.0
    %1153 = vmatprep.subr.mxu0 0.0
    %1154 = vmatpush2.msra.mxu0 0.0
    %1155 = vmatprep.subr.mxu0 0.0
    %1156 = vmatpush2.msra.mxu0 0.0
    %1157 = vmatprep.mubr.f32.mxu0 0.0
    %1158 = vmatmul.mubr.f32.gmra.mxu0 %v178
    %v1159 = vpop.f32.mrf.mxu0
    %v1160 = vadd.f32 0.0, %v1159
    %v1161 = vpop.f32.mrf.mxu0
    %1162 = vdwg.mxu0
    %v1163 = vadd.f32 %v1092, %v1160
    %v1164 = vxor.u32 %v1163, 2147483648
    %v1165 = vmul.f32 %v1164, 1.442695
    %v1166 = vpow.pop %v1165
    %v1167 = vadd.f32 %v1166, 1.0
    %v1168 = vrcp.pop %v1167
    %v1169 = vmul.f32 1.0, %v1168
    %v1170 = vtanh.pop %v1163
    %v1171 = vmul.f32 %v1169, 0.0
    %1173 = vrot.lane.b32.xlu0 %v1170, 64
    %v1174 = vpop.permute.xlu0 %1173
    %v1176 = vmul.f32 %v1169, %v1174
    %1178 = vrot.lane.b32.xlu0 %v1176, 32
    %v1179 = vpop.permute.xlu0 %1178
    %v1181 = vadd.f32 %v1171, %v1179
    %v1182 = vtanh.pop %v1181
    %1184 = vrot.lane.b32.xlu0 %v1182, 64
    %v1185 = vpop.permute.xlu0 %1184
    %v1187 = vmul.f32 %v1169, %v1185
    %v1188 = vld [vmem:[#allocation2 + $0x1] sm:$0x1]
    %1190 = vrot.lane.b32.xlu0 %v1187, 32
    %v1191 = vpop.permute.xlu0 %1190
    %v1192 = vsel %vm176, %v1191, 0
    %1194 = vmatprep.subr.mxu0 0.0
    %1195 = vmatpush1.msra.mxu0 0.0
    %1196 = vmatprep.subr.mxu0 0.0
    %1197 = vmatpush1.msra.mxu0 0.0
    %1198 = vmatprep.subr.mxu0 0.0
    %1199 = vmatpush1.msra.mxu0 0.0
    %1200 = vmatprep.subr.mxu0 0.0
    %1201 = vmatpush1.msra.mxu0 0.0
    %1202 = vmatprep.subr.mxu0 0.0
    %1203 = vmatpush1.msra.mxu0 0.0
    %1204 = vmatprep.subr.mxu0 0.0
    %1205 = vmatpush1.msra.mxu0 0.0
    %1206 = vmatprep.subr.mxu0 0.0
    %1207 = vmatpush1.msra.mxu0 0.0
    %1208 = vmatprep.subr.mxu0 0.0
    %1209 = vmatpush1.msra.mxu0 0.0
    %1210 = vmatprep.subr.mxu0 0.0
    %1211 = vmatpush1.msra.mxu0 0.0
    %1212 = vmatprep.subr.mxu0 0.0
    %1213 = vmatpush1.msra.mxu0 0.0
    %1214 = vmatprep.subr.mxu0 0.0
    %1215 = vmatpush1.msra.mxu0 0.0
    %1216 = vmatprep.subr.mxu0 0.0
    %1217 = vmatpush1.msra.mxu0 0.0
    %1218 = vmatprep.subr.mxu0 0.0
    %1219 = vmatpush1.msra.mxu0 %v1091
    %1220 = vmatprep.subr.mxu0 0.0
    %1221 = vmatpush1.msra.mxu0 %v1090
    %1222 = vmatprep.subr.mxu0 0.0
    %1223 = vmatpush1.msra.mxu0 %v1089
    %1224 = vmatprep.subr.mxu0 0.0
    %1225 = vmatpush1.msra.mxu0 %v1088
    %1226 = vmatprep.subr.mxu0 0.0
    %1227 = vmatpush2.msra.mxu0 0.0
    %1228 = vmatprep.subr.mxu0 0.0
    %1229 = vmatpush2.msra.mxu0 0.0
    %1230 = vmatprep.subr.mxu0 0.0
    %1231 = vmatpush2.msra.mxu0 0.0
    %1232 = vmatprep.subr.mxu0 0.0
    %1233 = vmatpush2.msra.mxu0 0.0
    %1234 = vmatprep.subr.mxu0 0.0
    %1235 = vmatpush2.msra.mxu0 0.0
    %1236 = vmatprep.subr.mxu0 0.0
    %1237 = vmatpush2.msra.mxu0 0.0
    %1238 = vmatprep.subr.mxu0 0.0
    %1239 = vmatpush2.msra.mxu0 0.0
    %1240 = vmatprep.subr.mxu0 0.0
    %1241 = vmatpush2.msra.mxu0 0.0
    %1242 = vmatprep.subr.mxu0 0.0
    %1243 = vmatpush2.msra.mxu0 0.0
    %1244 = vmatprep.subr.mxu0 0.0
    %1245 = vmatpush2.msra.mxu0 0.0
    %1246 = vmatprep.subr.mxu0 0.0
    %1247 = vmatpush2.msra.mxu0 0.0
    %1248 = vmatprep.subr.mxu0 0.0
    %1249 = vmatpush2.msra.mxu0 0.0
    %1250 = vmatprep.subr.mxu0 0.0
    %1251 = vmatpush2.msra.mxu0 0.0
    %1252 = vmatprep.subr.mxu0 0.0
    %1253 = vmatpush2.msra.mxu0 0.0
    %1254 = vmatprep.subr.mxu0 0.0
    %1255 = vmatpush2.msra.mxu0 0.0
    %1256 = vmatprep.subr.mxu0 0.0
    %1257 = vmatpush2.msra.mxu0 0.0
    %1258 = vmatprep.mubr.f32.mxu0 0.0
    %1259 = vmatmul.mubr.f32.gmra.mxu0 %v1192
    %v1260 = vpop.f32.mrf.mxu0
    %v1261 = vadd.f32 0.0, %v1260
    %v1262 = vpop.f32.mrf.mxu0
    %1263 = vdwg.mxu0
    %v1264 = vadd.f32 %v1188, %v1261
    %v1265 = vxor.u32 %v1264, 2147483648
    %v1266 = vmul.f32 %v1265, 1.442695
    %v1267 = vpow.pop %v1266
    %v1268 = vadd.f32 %v1267, 1.0
    %v1269 = vrcp.pop %v1268
    %v1270 = vmul.f32 1.0, %v1269
    %v1271 = vtanh.pop %v1264
    %v1272 = vmul.f32 %v1270, %v1181
    %1274 = vrot.lane.b32.xlu0 %v1271, 64
    %v1275 = vpop.permute.xlu0 %1274
    %v1277 = vmul.f32 %v1270, %v1275
    %1279 = vrot.lane.b32.xlu0 %v1277, 32
    %v1280 = vpop.permute.xlu0 %1279
    %v1282 = vadd.f32 %v1272, %v1280
    %v1283 = vtanh.pop %v1282
    %1285 = vrot.lane.b32.xlu0 %v1283, 64
    %v1286 = vpop.permute.xlu0 %1285
    %v1288 = vmul.f32 %v1270, %v1286
    %v1289 = vld [vmem:[#allocation2 + $0x2] sm:$0x1]
    %1291 = vrot.lane.b32.xlu0 %v1288, 32
    %v1292 = vpop.permute.xlu0 %1291
    %v1293 = vsel %vm176, %v1292, 0
    %1295 = vmatprep.subr.mxu0 0.0
    %1296 = vmatpush1.msra.mxu0 0.0
    %1297 = vmatprep.subr.mxu0 0.0
    %1298 = vmatpush1.msra.mxu0 0.0
    %1299 = vmatprep.subr.mxu0 0.0
    %1300 = vmatpush1.msra.mxu0 0.0
    %1301 = vmatprep.subr.mxu0 0.0
    %1302 = vmatpush1.msra.mxu0 0.0
    %1303 = vmatprep.subr.mxu0 0.0
    %1304 = vmatpush1.msra.mxu0 0.0
    %1305 = vmatprep.subr.mxu0 0.0
    %1306 = vmatpush1.msra.mxu0 0.0
    %1307 = vmatprep.subr.mxu0 0.0
    %1308 = vmatpush1.msra.mxu0 0.0
    %1309 = vmatprep.subr.mxu0 0.0
    %1310 = vmatpush1.msra.mxu0 0.0
    %1311 = vmatprep.subr.mxu0 0.0
    %1312 = vmatpush1.msra.mxu0 0.0
    %1313 = vmatprep.subr.mxu0 0.0
    %1314 = vmatpush1.msra.mxu0 0.0
    %1315 = vmatprep.subr.mxu0 0.0
    %1316 = vmatpush1.msra.mxu0 0.0
    %1317 = vmatprep.subr.mxu0 0.0
    %1318 = vmatpush1.msra.mxu0 0.0
    %1319 = vmatprep.subr.mxu0 0.0
    %1320 = vmatpush1.msra.mxu0 %v1091
    %1321 = vmatprep.subr.mxu0 0.0
    %1322 = vmatpush1.msra.mxu0 %v1090
    %1323 = vmatprep.subr.mxu0 0.0
    %1324 = vmatpush1.msra.mxu0 %v1089
    %1325 = vmatprep.subr.mxu0 0.0
    %1326 = vmatpush1.msra.mxu0 %v1088
    %1327 = vmatprep.subr.mxu0 0.0
    %1328 = vmatpush2.msra.mxu0 0.0
    %1329 = vmatprep.subr.mxu0 0.0
    %1330 = vmatpush2.msra.mxu0 0.0
    %1331 = vmatprep.subr.mxu0 0.0
    %1332 = vmatpush2.msra.mxu0 0.0
    %1333 = vmatprep.subr.mxu0 0.0
    %1334 = vmatpush2.msra.mxu0 0.0
    %1335 = vmatprep.subr.mxu0 0.0
    %1336 = vmatpush2.msra.mxu0 0.0
    %1337 = vmatprep.subr.mxu0 0.0
    %1338 = vmatpush2.msra.mxu0 0.0
    %1339 = vmatprep.subr.mxu0 0.0
    %1340 = vmatpush2.msra.mxu0 0.0
    %1341 = vmatprep.subr.mxu0 0.0
    %1342 = vmatpush2.msra.mxu0 0.0
    %1343 = vmatprep.subr.mxu0 0.0
    %1344 = vmatpush2.msra.mxu0 0.0
    %1345 = vmatprep.subr.mxu0 0.0
    %1346 = vmatpush2.msra.mxu0 0.0
    %1347 = vmatprep.subr.mxu0 0.0
    %1348 = vmatpush2.msra.mxu0 0.0
    %1349 = vmatprep.subr.mxu0 0.0
    %1350 = vmatpush2.msra.mxu0 0.0
    %1351 = vmatprep.subr.mxu0 0.0
    %1352 = vmatpush2.msra.mxu0 0.0
    %1353 = vmatprep.subr.mxu0 0.0
    %1354 = vmatpush2.msra.mxu0 0.0
    %1355 = vmatprep.subr.mxu0 0.0
    %1356 = vmatpush2.msra.mxu0 0.0
    %1357 = vmatprep.subr.mxu0 0.0
    %1358 = vmatpush2.msra.mxu0 0.0
    %1359 = vmatprep.mubr.f32.mxu0 0.0
    %1360 = vmatmul.mubr.f32.gmra.mxu0 %v1293
    %v1361 = vpop.f32.mrf.mxu0
    %v1362 = vadd.f32 0.0, %v1361
    %v1363 = vpop.f32.mrf.mxu0
    %1364 = vdwg.mxu0
    %v1365 = vadd.f32 %v1289, %v1362
    %v1366 = vxor.u32 %v1365, 2147483648
    %v1367 = vmul.f32 %v1366, 1.442695
    %v1368 = vpow.pop %v1367
    %v1369 = vadd.f32 %v1368, 1.0
    %v1370 = vrcp.pop %v1369
    %v1371 = vmul.f32 1.0, %v1370
    %v1372 = vtanh.pop %v1365
    %v1373 = vmul.f32 %v1371, %v1282
    %1375 = vrot.lane.b32.xlu0 %v1372, 64
    %v1376 = vpop.permute.xlu0 %1375
    %v1378 = vmul.f32 %v1371, %v1376
    %1380 = vrot.lane.b32.xlu0 %v1378, 32
    %v1381 = vpop.permute.xlu0 %1380
    %v1383 = vadd.f32 %v1373, %v1381
    %v1384 = vtanh.pop %v1383
    %1386 = vrot.lane.b32.xlu0 %v1384, 64
    %v1387 = vpop.permute.xlu0 %1386
    %v1389 = vmul.f32 %v1371, %v1387
    %v1390 = vld [vmem:[#allocation2 + $0x3] sm:$0x1]
    %1392 = vrot.lane.b32.xlu0 %v1389, 32
    %v1393 = vpop.permute.xlu0 %1392
    %v1394 = vsel %vm176, %v1393, 0
    %1396 = vmatprep.subr.mxu0 0.0
    %1397 = vmatpush1.msra.mxu0 0.0
    %1398 = vmatprep.subr.mxu0 0.0
    %1399 = vmatpush1.msra.mxu0 0.0
    %1400 = vmatprep.subr.mxu0 0.0
    %1401 = vmatpush1.msra.mxu0 0.0
    %1402 = vmatprep.subr.mxu0 0.0
    %1403 = vmatpush1.msra.mxu0 0.0
    %1404 = vmatprep.subr.mxu0 0.0
    %1405 = vmatpush1.msra.mxu0 0.0
    %1406 = vmatprep.subr.mxu0 0.0
    %1407 = vmatpush1.msra.mxu0 0.0
    %1408 = vmatprep.subr.mxu0 0.0
    %1409 = vmatpush1.msra.mxu0 0.0
    %1410 = vmatprep.subr.mxu0 0.0
    %1411 = vmatpush1.msra.mxu0 0.0
    %1412 = vmatprep.subr.mxu0 0.0
    %1413 = vmatpush1.msra.mxu0 0.0
    %1414 = vmatprep.subr.mxu0 0.0
    %1415 = vmatpush1.msra.mxu0 0.0
    %1416 = vmatprep.subr.mxu0 0.0
    %1417 = vmatpush1.msra.mxu0 0.0
    %1418 = vmatprep.subr.mxu0 0.0
    %1419 = vmatpush1.msra.mxu0 0.0
    %1420 = vmatprep.subr.mxu0 0.0
    %1421 = vmatpush1.msra.mxu0 %v1091
    %1422 = vmatprep.subr.mxu0 0.0
    %1423 = vmatpush1.msra.mxu0 %v1090
    %1424 = vmatprep.subr.mxu0 0.0
    %1425 = vmatpush1.msra.mxu0 %v1089
    %1426 = vmatprep.subr.mxu0 0.0
    %1427 = vmatpush1.msra.mxu0 %v1088
    %1428 = vmatprep.subr.mxu0 0.0
    %1429 = vmatpush2.msra.mxu0 0.0
    %1430 = vmatprep.subr.mxu0 0.0
    %1431 = vmatpush2.msra.mxu0 0.0
    %1432 = vmatprep.subr.mxu0 0.0
    %1433 = vmatpush2.msra.mxu0 0.0
    %1434 = vmatprep.subr.mxu0 0.0
    %1435 = vmatpush2.msra.mxu0 0.0
    %1436 = vmatprep.subr.mxu0 0.0
    %1437 = vmatpush2.msra.mxu0 0.0
    %1438 = vmatprep.subr.mxu0 0.0
    %1439 = vmatpush2.msra.mxu0 0.0
    %1440 = vmatprep.subr.mxu0 0.0
    %1441 = vmatpush2.msra.mxu0 0.0
    %1442 = vmatprep.subr.mxu0 0.0
    %1443 = vmatpush2.msra.mxu0 0.0
    %1444 = vmatprep.subr.mxu0 0.0
    %1445 = vmatpush2.msra.mxu0 0.0
    %1446 = vmatprep.subr.mxu0 0.0
    %1447 = vmatpush2.msra.mxu0 0.0
    %1448 = vmatprep.subr.mxu0 0.0
    %1449 = vmatpush2.msra.mxu0 0.0
    %1450 = vmatprep.subr.mxu0 0.0
    %1451 = vmatpush2.msra.mxu0 0.0
    %1452 = vmatprep.subr.mxu0 0.0
    %1453 = vmatpush2.msra.mxu0 0.0
    %1454 = vmatprep.subr.mxu0 0.0
    %1455 = vmatpush2.msra.mxu0 0.0
    %1456 = vmatprep.subr.mxu0 0.0
    %1457 = vmatpush2.msra.mxu0 0.0
    %1458 = vmatprep.subr.mxu0 0.0
    %1459 = vmatpush2.msra.mxu0 0.0
    %1460 = vmatprep.mubr.f32.mxu0 0.0
    %1461 = vmatmul.mubr.f32.gmra.mxu0 %v1394
    %v1462 = vpop.f32.mrf.mxu0
    %v1463 = vadd.f32 0.0, %v1462
    %v1464 = vpop.f32.mrf.mxu0
    %1465 = vdwg.mxu0
    %v1466 = vadd.f32 %v1390, %v1463
    %v1467 = vxor.u32 %v1466, 2147483648
    %v1468 = vmul.f32 %v1467, 1.442695
    %v1469 = vpow.pop %v1468
    %v1470 = vadd.f32 %v1469, 1.0
    %v1471 = vrcp.pop %v1470
    %v1472 = vmul.f32 1.0, %v1471
    %v1473 = vtanh.pop %v1466
    %v1474 = vmul.f32 %v1472, %v1383
    %1476 = vrot.lane.b32.xlu0 %v1473, 64
    %v1477 = vpop.permute.xlu0 %1476
    %v1479 = vmul.f32 %v1472, %v1477
    %1481 = vrot.lane.b32.xlu0 %v1479, 32
    %v1482 = vpop.permute.xlu0 %1481
    %v1484 = vadd.f32 %v1474, %v1482
    %v1485 = vtanh.pop %v1484
    %1487 = vrot.lane.b32.xlu0 %v1485, 64
    %v1488 = vpop.permute.xlu0 %1487
    %v1490 = vmul.f32 %v1472, %v1488
    %v1491 = vld [vmem:[#allocation2 + $0x4] sm:$0x1]
    %1493 = vrot.lane.b32.xlu0 %v1490, 32
    %v1494 = vpop.permute.xlu0 %1493
    %v1495 = vsel %vm176, %v1494, 0
    %1497 = vmatprep.subr.mxu0 0.0
    %1498 = vmatpush1.msra.mxu0 0.0
    %1499 = vmatprep.subr.mxu0 0.0
    %1500 = vmatpush1.msra.mxu0 0.0
    %1501 = vmatprep.subr.mxu0 0.0
    %1502 = vmatpush1.msra.mxu0 0.0
    %1503 = vmatprep.subr.mxu0 0.0
    %1504 = vmatpush1.msra.mxu0 0.0
    %1505 = vmatprep.subr.mxu0 0.0
    %1506 = vmatpush1.msra.mxu0 0.0
    %1507 = vmatprep.subr.mxu0 0.0
    %1508 = vmatpush1.msra.mxu0 0.0
    %1509 = vmatprep.subr.mxu0 0.0
    %1510 = vmatpush1.msra.mxu0 0.0
    %1511 = vmatprep.subr.mxu0 0.0
    %1512 = vmatpush1.msra.mxu0 0.0
    %1513 = vmatprep.subr.mxu0 0.0
    %1514 = vmatpush1.msra.mxu0 0.0
    %1515 = vmatprep.subr.mxu0 0.0
    %1516 = vmatpush1.msra.mxu0 0.0
    %1517 = vmatprep.subr.mxu0 0.0
    %1518 = vmatpush1.msra.mxu0 0.0
    %1519 = vmatprep.subr.mxu0 0.0
    %1520 = vmatpush1.msra.mxu0 0.0
    %1521 = vmatprep.subr.mxu0 0.0
    %1522 = vmatpush1.msra.mxu0 %v1091
    %1523 = vmatprep.subr.mxu0 0.0
    %1524 = vmatpush1.msra.mxu0 %v1090
    %1525 = vmatprep.subr.mxu0 0.0
    %1526 = vmatpush1.msra.mxu0 %v1089
    %1527 = vmatprep.subr.mxu0 0.0
    %1528 = vmatpush1.msra.mxu0 %v1088
    %1529 = vmatprep.subr.mxu0 0.0
    %1530 = vmatpush2.msra.mxu0 0.0
    %1531 = vmatprep.subr.mxu0 0.0
    %1532 = vmatpush2.msra.mxu0 0.0
    %1533 = vmatprep.subr.mxu0 0.0
    %1534 = vmatpush2.msra.mxu0 0.0
    %1535 = vmatprep.subr.mxu0 0.0
    %1536 = vmatpush2.msra.mxu0 0.0
    %1537 = vmatprep.subr.mxu0 0.0
    %1538 = vmatpush2.msra.mxu0 0.0
    %1539 = vmatprep.subr.mxu0 0.0
    %1540 = vmatpush2.msra.mxu0 0.0
    %1541 = vmatprep.subr.mxu0 0.0
    %1542 = vmatpush2.msra.mxu0 0.0
    %1543 = vmatprep.subr.mxu0 0.0
    %1544 = vmatpush2.msra.mxu0 0.0
    %1545 = vmatprep.subr.mxu0 0.0
    %1546 = vmatpush2.msra.mxu0 0.0
    %1547 = vmatprep.subr.mxu0 0.0
    %1548 = vmatpush2.msra.mxu0 0.0
    %1549 = vmatprep.subr.mxu0 0.0
    %1550 = vmatpush2.msra.mxu0 0.0
    %1551 = vmatprep.subr.mxu0 0.0
    %1552 = vmatpush2.msra.mxu0 0.0
    %1553 = vmatprep.subr.mxu0 0.0
    %1554 = vmatpush2.msra.mxu0 0.0
    %1555 = vmatprep.subr.mxu0 0.0
    %1556 = vmatpush2.msra.mxu0 0.0
    %1557 = vmatprep.subr.mxu0 0.0
    %1558 = vmatpush2.msra.mxu0 0.0
    %1559 = vmatprep.subr.mxu0 0.0
    %1560 = vmatpush2.msra.mxu0 0.0
    %1561 = vmatprep.mubr.f32.mxu0 0.0
    %1562 = vmatmul.mubr.f32.gmra.mxu0 %v1495
    %v1563 = vpop.f32.mrf.mxu0
    %v1564 = vadd.f32 0.0, %v1563
    %v1565 = vpop.f32.mrf.mxu0
    %1566 = vdwg.mxu0
    %v1567 = vadd.f32 %v1491, %v1564
    %v1568 = vxor.u32 %v1567, 2147483648
    %v1569 = vmul.f32 %v1568, 1.442695
    %v1570 = vpow.pop %v1569
    %v1571 = vadd.f32 %v1570, 1.0
    %v1572 = vrcp.pop %v1571
    %v1573 = vmul.f32 1.0, %v1572
    %v1574 = vtanh.pop %v1567
    %v1575 = vmul.f32 %v1573, %v1484
    %1577 = vrot.lane.b32.xlu0 %v1574, 64
    %v1578 = vpop.permute.xlu0 %1577
    %v1580 = vmul.f32 %v1573, %v1578
    %1582 = vrot.lane.b32.xlu0 %v1580, 32
    %v1583 = vpop.permute.xlu0 %1582
    %v1585 = vadd.f32 %v1575, %v1583
    %v1586 = vtanh.pop %v1585
    %1588 = vrot.lane.b32.xlu0 %v1586, 64
    %v1589 = vpop.permute.xlu0 %1588
    %v1591 = vmul.f32 %v1573, %v1589
    %v1592 = vld [vmem:[#allocation2 + $0x5] sm:$0x1]
    %1594 = vrot.lane.b32.xlu0 %v1591, 32
    %v1595 = vpop.permute.xlu0 %1594
    %v1596 = vsel %vm176, %v1595, 0
    %1598 = vmatprep.subr.mxu0 0.0
    %1599 = vmatpush1.msra.mxu0 0.0
    %1600 = vmatprep.subr.mxu0 0.0
    %1601 = vmatpush1.msra.mxu0 0.0
    %1602 = vmatprep.subr.mxu0 0.0
    %1603 = vmatpush1.msra.mxu0 0.0
    %1604 = vmatprep.subr.mxu0 0.0
    %1605 = vmatpush1.msra.mxu0 0.0
    %1606 = vmatprep.subr.mxu0 0.0
    %1607 = vmatpush1.msra.mxu0 0.0
    %1608 = vmatprep.subr.mxu0 0.0
    %1609 = vmatpush1.msra.mxu0 0.0
    %1610 = vmatprep.subr.mxu0 0.0
    %1611 = vmatpush1.msra.mxu0 0.0
    %1612 = vmatprep.subr.mxu0 0.0
    %1613 = vmatpush1.msra.mxu0 0.0
    %1614 = vmatprep.subr.mxu0 0.0
    %1615 = vmatpush1.msra.mxu0 0.0
    %1616 = vmatprep.subr.mxu0 0.0
    %1617 = vmatpush1.msra.mxu0 0.0
    %1618 = vmatprep.subr.mxu0 0.0
    %1619 = vmatpush1.msra.mxu0 0.0
    %1620 = vmatprep.subr.mxu0 0.0
    %1621 = vmatpush1.msra.mxu0 0.0
    %1622 = vmatprep.subr.mxu0 0.0
    %1623 = vmatpush1.msra.mxu0 %v1091
    %1624 = vmatprep.subr.mxu0 0.0
    %1625 = vmatpush1.msra.mxu0 %v1090
    %1626 = vmatprep.subr.mxu0 0.0
    %1627 = vmatpush1.msra.mxu0 %v1089
    %1628 = vmatprep.subr.mxu0 0.0
    %1629 = vmatpush1.msra.mxu0 %v1088
    %1630 = vmatprep.subr.mxu0 0.0
    %1631 = vmatpush2.msra.mxu0 0.0
    %1632 = vmatprep.subr.mxu0 0.0
    %1633 = vmatpush2.msra.mxu0 0.0
    %1634 = vmatprep.subr.mxu0 0.0
    %1635 = vmatpush2.msra.mxu0 0.0
    %1636 = vmatprep.subr.mxu0 0.0
    %1637 = vmatpush2.msra.mxu0 0.0
    %1638 = vmatprep.subr.mxu0 0.0
    %1639 = vmatpush2.msra.mxu0 0.0
    %1640 = vmatprep.subr.mxu0 0.0
    %1641 = vmatpush2.msra.mxu0 0.0
    %1642 = vmatprep.subr.mxu0 0.0
    %1643 = vmatpush2.msra.mxu0 0.0
    %1644 = vmatprep.subr.mxu0 0.0
    %1645 = vmatpush2.msra.mxu0 0.0
    %1646 = vmatprep.subr.mxu0 0.0
    %1647 = vmatpush2.msra.mxu0 0.0
    %1648 = vmatprep.subr.mxu0 0.0
    %1649 = vmatpush2.msra.mxu0 0.0
    %1650 = vmatprep.subr.mxu0 0.0
    %1651 = vmatpush2.msra.mxu0 0.0
    %1652 = vmatprep.subr.mxu0 0.0
    %1653 = vmatpush2.msra.mxu0 0.0
    %1654 = vmatprep.subr.mxu0 0.0
    %1655 = vmatpush2.msra.mxu0 0.0
    %1656 = vmatprep.subr.mxu0 0.0
    %1657 = vmatpush2.msra.mxu0 0.0
    %1658 = vmatprep.subr.mxu0 0.0
    %1659 = vmatpush2.msra.mxu0 0.0
    %1660 = vmatprep.subr.mxu0 0.0
    %1661 = vmatpush2.msra.mxu0 0.0
    %1662 = vmatprep.mubr.f32.mxu0 0.0
    %1663 = vmatmul.mubr.f32.gmra.mxu0 %v1596
    %v1664 = vpop.f32.mrf.mxu0
    %v1665 = vadd.f32 0.0, %v1664
    %v1666 = vpop.f32.mrf.mxu0
    %1667 = vdwg.mxu0
    %v1668 = vadd.f32 %v1592, %v1665
    %v1669 = vxor.u32 %v1668, 2147483648
    %v1670 = vmul.f32 %v1669, 1.442695
    %v1671 = vpow.pop %v1670
    %v1672 = vadd.f32 %v1671, 1.0
    %v1673 = vrcp.pop %v1672
    %v1674 = vmul.f32 1.0, %v1673
    %v1675 = vtanh.pop %v1668
    %v1676 = vmul.f32 %v1674, %v1585
    %1678 = vrot.lane.b32.xlu0 %v1675, 64
    %v1679 = vpop.permute.xlu0 %1678
    %v1681 = vmul.f32 %v1674, %v1679
    %1683 = vrot.lane.b32.xlu0 %v1681, 32
    %v1684 = vpop.permute.xlu0 %1683
    %v1686 = vadd.f32 %v1676, %v1684
    %v1687 = vtanh.pop %v1686
    %1689 = vrot.lane.b32.xlu0 %v1687, 64
    %v1690 = vpop.permute.xlu0 %1689
    %v1692 = vmul.f32 %v1674, %v1690
    %v1693 = vld [vmem:[#allocation2 + $0x6] sm:$0x1]
    %1695 = vrot.lane.b32.xlu0 %v1692, 32
    %v1696 = vpop.permute.xlu0 %1695
    %v1697 = vsel %vm176, %v1696, 0
    %1699 = vmatprep.subr.mxu0 0.0
    %1700 = vmatpush1.msra.mxu0 0.0
    %1701 = vmatprep.subr.mxu0 0.0
    %1702 = vmatpush1.msra.mxu0 0.0
    %1703 = vmatprep.subr.mxu0 0.0
    %1704 = vmatpush1.msra.mxu0 0.0
    %1705 = vmatprep.subr.mxu0 0.0
    %1706 = vmatpush1.msra.mxu0 0.0
    %1707 = vmatprep.subr.mxu0 0.0
    %1708 = vmatpush1.msra.mxu0 0.0
    %1709 = vmatprep.subr.mxu0 0.0
    %1710 = vmatpush1.msra.mxu0 0.0
    %1711 = vmatprep.subr.mxu0 0.0
    %1712 = vmatpush1.msra.mxu0 0.0
    %1713 = vmatprep.subr.mxu0 0.0
    %1714 = vmatpush1.msra.mxu0 0.0
    %1715 = vmatprep.subr.mxu0 0.0
    %1716 = vmatpush1.msra.mxu0 0.0
    %1717 = vmatprep.subr.mxu0 0.0
    %1718 = vmatpush1.msra.mxu0 0.0
    %1719 = vmatprep.subr.mxu0 0.0
    %1720 = vmatpush1.msra.mxu0 0.0
    %1721 = vmatprep.subr.mxu0 0.0
    %1722 = vmatpush1.msra.mxu0 0.0
    %1723 = vmatprep.subr.mxu0 0.0
    %1724 = vmatpush1.msra.mxu0 %v1091
    %1725 = vmatprep.subr.mxu0 0.0
    %1726 = vmatpush1.msra.mxu0 %v1090
    %1727 = vmatprep.subr.mxu0 0.0
    %1728 = vmatpush1.msra.mxu0 %v1089
    %1729 = vmatprep.subr.mxu0 0.0
    %1730 = vmatpush1.msra.mxu0 %v1088
    %1731 = vmatprep.subr.mxu0 0.0
    %1732 = vmatpush2.msra.mxu0 0.0
    %1733 = vmatprep.subr.mxu0 0.0
    %1734 = vmatpush2.msra.mxu0 0.0
    %1735 = vmatprep.subr.mxu0 0.0
    %1736 = vmatpush2.msra.mxu0 0.0
    %1737 = vmatprep.subr.mxu0 0.0
    %1738 = vmatpush2.msra.mxu0 0.0
    %1739 = vmatprep.subr.mxu0 0.0
    %1740 = vmatpush2.msra.mxu0 0.0
    %1741 = vmatprep.subr.mxu0 0.0
    %1742 = vmatpush2.msra.mxu0 0.0
    %1743 = vmatprep.subr.mxu0 0.0
    %1744 = vmatpush2.msra.mxu0 0.0
    %1745 = vmatprep.subr.mxu0 0.0
    %1746 = vmatpush2.msra.mxu0 0.0
    %1747 = vmatprep.subr.mxu0 0.0
    %1748 = vmatpush2.msra.mxu0 0.0
    %1749 = vmatprep.subr.mxu0 0.0
    %1750 = vmatpush2.msra.mxu0 0.0
    %1751 = vmatprep.subr.mxu0 0.0
    %1752 = vmatpush2.msra.mxu0 0.0
    %1753 = vmatprep.subr.mxu0 0.0
    %1754 = vmatpush2.msra.mxu0 0.0
    %1755 = vmatprep.subr.mxu0 0.0
    %1756 = vmatpush2.msra.mxu0 0.0
    %1757 = vmatprep.subr.mxu0 0.0
    %1758 = vmatpush2.msra.mxu0 0.0
    %1759 = vmatprep.subr.mxu0 0.0
    %1760 = vmatpush2.msra.mxu0 0.0
    %1761 = vmatprep.subr.mxu0 0.0
    %1762 = vmatpush2.msra.mxu0 0.0
    %1763 = vmatprep.mubr.f32.mxu0 0.0
    %1764 = vmatmul.mubr.f32.gmra.mxu0 %v1697
    %v1765 = vpop.f32.mrf.mxu0
    %v1766 = vadd.f32 0.0, %v1765
    %v1767 = vpop.f32.mrf.mxu0
    %1768 = vdwg.mxu0
    %v1769 = vadd.f32 %v1693, %v1766
    %v1770 = vxor.u32 %v1769, 2147483648
    %v1771 = vmul.f32 %v1770, 1.442695
    %v1772 = vpow.pop %v1771
    %v1773 = vadd.f32 %v1772, 1.0
    %v1774 = vrcp.pop %v1773
    %v1775 = vmul.f32 1.0, %v1774
    %v1776 = vtanh.pop %v1769
    %v1777 = vmul.f32 %v1775, %v1686
    %1779 = vrot.lane.b32.xlu0 %v1776, 64
    %v1780 = vpop.permute.xlu0 %1779
    %v1782 = vmul.f32 %v1775, %v1780
    %1784 = vrot.lane.b32.xlu0 %v1782, 32
    %v1785 = vpop.permute.xlu0 %1784
    %v1787 = vadd.f32 %v1777, %v1785
    %v1788 = vtanh.pop %v1787
    %1790 = vrot.lane.b32.xlu0 %v1788, 64
    %v1791 = vpop.permute.xlu0 %1790
    %v1793 = vmul.f32 %v1775, %v1791
    %v1794 = vld [vmem:[#allocation2 + $0x7] sm:$0x1]
    %1796 = vrot.lane.b32.xlu0 %v1793, 32
    %v1797 = vpop.permute.xlu0 %1796
    %v1798 = vsel %vm176, %v1797, 0
    %1800 = vmatprep.subr.mxu0 0.0
    %1801 = vmatpush1.msra.mxu0 0.0
    %1802 = vmatprep.subr.mxu0 0.0
    %1803 = vmatpush1.msra.mxu0 0.0
    %1804 = vmatprep.subr.mxu0 0.0
    %1805 = vmatpush1.msra.mxu0 0.0
    %1806 = vmatprep.subr.mxu0 0.0
    %1807 = vmatpush1.msra.mxu0 0.0
    %1808 = vmatprep.subr.mxu0 0.0
    %1809 = vmatpush1.msra.mxu0 0.0
    %1810 = vmatprep.subr.mxu0 0.0
    %1811 = vmatpush1.msra.mxu0 0.0
    %1812 = vmatprep.subr.mxu0 0.0
    %1813 = vmatpush1.msra.mxu0 0.0
    %1814 = vmatprep.subr.mxu0 0.0
    %1815 = vmatpush1.msra.mxu0 0.0
    %1816 = vmatprep.subr.mxu0 0.0
    %1817 = vmatpush1.msra.mxu0 0.0
    %1818 = vmatprep.subr.mxu0 0.0
    %1819 = vmatpush1.msra.mxu0 0.0
    %1820 = vmatprep.subr.mxu0 0.0
    %1821 = vmatpush1.msra.mxu0 0.0
    %1822 = vmatprep.subr.mxu0 0.0
    %1823 = vmatpush1.msra.mxu0 0.0
    %1824 = vmatprep.subr.mxu0 0.0
    %1825 = vmatpush1.msra.mxu0 %v1091
    %1826 = vmatprep.subr.mxu0 0.0
    %1827 = vmatpush1.msra.mxu0 %v1090
    %1828 = vmatprep.subr.mxu0 0.0
    %1829 = vmatpush1.msra.mxu0 %v1089
    %1830 = vmatprep.subr.mxu0 0.0
    %1831 = vmatpush1.msra.mxu0 %v1088
    %1832 = vmatprep.subr.mxu0 0.0
    %1833 = vmatpush2.msra.mxu0 0.0
    %1834 = vmatprep.subr.mxu0 0.0
    %1835 = vmatpush2.msra.mxu0 0.0
    %1836 = vmatprep.subr.mxu0 0.0
    %1837 = vmatpush2.msra.mxu0 0.0
    %1838 = vmatprep.subr.mxu0 0.0
    %1839 = vmatpush2.msra.mxu0 0.0
    %1840 = vmatprep.subr.mxu0 0.0
    %1841 = vmatpush2.msra.mxu0 0.0
    %1842 = vmatprep.subr.mxu0 0.0
    %1843 = vmatpush2.msra.mxu0 0.0
    %1844 = vmatprep.subr.mxu0 0.0
    %1845 = vmatpush2.msra.mxu0 0.0
    %1846 = vmatprep.subr.mxu0 0.0
    %1847 = vmatpush2.msra.mxu0 0.0
    %1848 = vmatprep.subr.mxu0 0.0
    %1849 = vmatpush2.msra.mxu0 0.0
    %1850 = vmatprep.subr.mxu0 0.0
    %1851 = vmatpush2.msra.mxu0 0.0
    %1852 = vmatprep.subr.mxu0 0.0
    %1853 = vmatpush2.msra.mxu0 0.0
    %1854 = vmatprep.subr.mxu0 0.0
    %1855 = vmatpush2.msra.mxu0 0.0
    %1856 = vmatprep.subr.mxu0 0.0
    %1857 = vmatpush2.msra.mxu0 0.0
    %1858 = vmatprep.subr.mxu0 0.0
    %1859 = vmatpush2.msra.mxu0 0.0
    %1860 = vmatprep.subr.mxu0 0.0
    %1861 = vmatpush2.msra.mxu0 0.0
    %1862 = vmatprep.subr.mxu0 0.0
    %1863 = vmatpush2.msra.mxu0 0.0
    %1864 = vmatprep.mubr.f32.mxu0 0.0
    %1865 = vmatmul.mubr.f32.gmra.mxu0 %v1798
    %v1866 = vpop.f32.mrf.mxu0
    %v1867 = vadd.f32 0.0, %v1866
    %v1868 = vpop.f32.mrf.mxu0
    %1869 = vdwg.mxu0
    %v1870 = vadd.f32 %v1794, %v1867
    %v1871 = vxor.u32 %v1870, 2147483648
    %v1872 = vmul.f32 %v1871, 1.442695
    %v1873 = vpow.pop %v1872
    %v1874 = vadd.f32 %v1873, 1.0
    %v1875 = vrcp.pop %v1874
    %v1876 = vmul.f32 1.0, %v1875
    %v1877 = vtanh.pop %v1870
    %v1878 = vmul.f32 %v1876, %v1787
    %1880 = vrot.lane.b32.xlu0 %v1877, 64
    %v1881 = vpop.permute.xlu0 %1880
    %v1883 = vmul.f32 %v1876, %v1881
    %1885 = vrot.lane.b32.xlu0 %v1883, 32
    %v1886 = vpop.permute.xlu0 %1885
    %v1888 = vadd.f32 %v1878, %v1886
    %v1889 = vtanh.pop %v1888
    %1891 = vrot.lane.b32.xlu0 %v1889, 64
    %v1892 = vpop.permute.xlu0 %1891
    %v1894 = vmul.f32 %v1876, %v1892
    %v1895 = vld [vmem:[%s7] sm:$0xff]
    %v1896 = vld [vmem:[%s7 + $0x8] sm:$0xff]
    %v1897 = vld [vmem:[%s7 + $0x10] sm:$0xff]
    %v1898 = vld [vmem:[%s7 + $0x18] sm:$0xff]
    %v1899 = vld [vmem:[#allocation10] sm:$0x1]
    %1901 = vrot.lane.b32.xlu0 %v1894, 32
    %v1902 = vpop.permute.xlu0 %1901
    %v1903 = vsel %vm176, %v1902, 0
    %1905 = vmatprep.subr.mxu0 0.0
    %1906 = vmatpush1.msra.mxu0 0.0
    %1907 = vmatprep.subr.mxu0 0.0
    %1908 = vmatpush1.msra.mxu0 0.0
    %1909 = vmatprep.subr.mxu0 0.0
    %1910 = vmatpush1.msra.mxu0 0.0
    %1911 = vmatprep.subr.mxu0 0.0
    %1912 = vmatpush1.msra.mxu0 0.0
    %1913 = vmatprep.subr.mxu0 0.0
    %1914 = vmatpush1.msra.mxu0 0.0
    %1915 = vmatprep.subr.mxu0 0.0
    %1916 = vmatpush1.msra.mxu0 0.0
    %1917 = vmatprep.subr.mxu0 0.0
    %1918 = vmatpush1.msra.mxu0 0.0
    %1919 = vmatprep.subr.mxu0 0.0
    %1920 = vmatpush1.msra.mxu0 0.0
    %1921 = vmatprep.subr.mxu0 0.0
    %1922 = vmatpush1.msra.mxu0 0.0
    %1923 = vmatprep.subr.mxu0 0.0
    %1924 = vmatpush1.msra.mxu0 0.0
    %1925 = vmatprep.subr.mxu0 0.0
    %1926 = vmatpush1.msra.mxu0 0.0
    %1927 = vmatprep.subr.mxu0 0.0
    %1928 = vmatpush1.msra.mxu0 0.0
    %1929 = vmatprep.subr.mxu0 0.0
    %1930 = vmatpush1.msra.mxu0 %v1898
    %1931 = vmatprep.subr.mxu0 0.0
    %1932 = vmatpush1.msra.mxu0 %v1897
    %1933 = vmatprep.subr.mxu0 0.0
    %1934 = vmatpush1.msra.mxu0 %v1896
    %1935 = vmatprep.subr.mxu0 0.0
    %1936 = vmatpush1.msra.mxu0 %v1895
    %1937 = vmatprep.subr.mxu0 0.0
    %1938 = vmatpush2.msra.mxu0 0.0
    %1939 = vmatprep.subr.mxu0 0.0
    %1940 = vmatpush2.msra.mxu0 0.0
    %1941 = vmatprep.subr.mxu0 0.0
    %1942 = vmatpush2.msra.mxu0 0.0
    %1943 = vmatprep.subr.mxu0 0.0
    %1944 = vmatpush2.msra.mxu0 0.0
    %1945 = vmatprep.subr.mxu0 0.0
    %1946 = vmatpush2.msra.mxu0 0.0
    %1947 = vmatprep.subr.mxu0 0.0
    %1948 = vmatpush2.msra.mxu0 0.0
    %1949 = vmatprep.subr.mxu0 0.0
    %1950 = vmatpush2.msra.mxu0 0.0
    %1951 = vmatprep.subr.mxu0 0.0
    %1952 = vmatpush2.msra.mxu0 0.0
    %1953 = vmatprep.subr.mxu0 0.0
    %1954 = vmatpush2.msra.mxu0 0.0
    %1955 = vmatprep.subr.mxu0 0.0
    %1956 = vmatpush2.msra.mxu0 0.0
    %1957 = vmatprep.subr.mxu0 0.0
    %1958 = vmatpush2.msra.mxu0 0.0
    %1959 = vmatprep.subr.mxu0 0.0
    %1960 = vmatpush2.msra.mxu0 0.0
    %1961 = vmatprep.subr.mxu0 0.0
    %1962 = vmatpush2.msra.mxu0 0.0
    %1963 = vmatprep.subr.mxu0 0.0
    %1964 = vmatpush2.msra.mxu0 0.0
    %1965 = vmatprep.subr.mxu0 0.0
    %1966 = vmatpush2.msra.mxu0 0.0
    %1967 = vmatprep.subr.mxu0 0.0
    %1968 = vmatpush2.msra.mxu0 0.0
    %1969 = vmatprep.mubr.f32.mxu0 0.0
    %1970 = vmatmul.mubr.f32.gmra.mxu0 %v1903
    %v1971 = vpop.f32.mrf.mxu0
    %v1972 = vadd.f32 %v1899, %v1971
    %v1973 = vpop.f32.mrf.mxu0
    %1974 = vdwg.mxu0
    %vm1975 = vcmask 24576
    %1976 = vst.msk [vmem:[#allocation12] sm:$0x1] %vm1975, %v1972
    // Predicated region
    $region54: #{lstm_classifier_forward.1} parent=1 // pred_check
      _
    $region55: #{lstm_classifier_forward.1} parent=1 // pred_check_branch
      %1978 = sbr.rel (0) target = $region57
    $region56: #{lstm_classifier_forward.1} parent=1 // pred_region
      %s1980 = ssub.s32 16, 16
      %1981 = vsyncadd [#allocation6], %s1980
      %s1983 = sshll.u32 [#allocation12], 4
      %s1984 = int_to_ptr.vmem [resolvable:$true] %s1983
      %1986 = dma.vmem_to_hbm [thread:$0]  %s1984, 16, %s9, [#allocation6]
    $region57: #{lstm_classifier_forward.1} parent=1 // pred_fallthru
      _
    // Predicated region
    $region58: #{lstm_classifier_forward.1} parent=1 // pred_check
      _
    $region59: #{lstm_classifier_forward.1} parent=1 // pred_check_branch
      %1988 = sbr.rel (0) target = $region61
    $region60: #{lstm_classifier_forward.1} parent=1 // pred_region
      %1989 = dma.done [#allocation6], 16
    $region61: #{lstm_classifier_forward.1} parent=1 // pred_fallthru
      _
    %1990 = vsyncpa [#allocation5], 1
    %1991 = vsyncpa [#allocation8], 1
    %1992 = vsyncpa [#allocation11], 1
    %1993 = vsyncpa [#allocation6], 1

</llo_original>
